<compile_context>
chip_gen: v7x
topology: tpu7x:2x2x1
jax: 0.10.0
libtpu: 0.0.40
codegen_flags: <defaults>
</compile_context>

<pallas_src>
import functools
import math

import jax
import jax.numpy as jnp
import numpy as np
from jax.experimental import pallas as pl
from jax.experimental.pallas import tpu as pltpu

_LN_EPS = 1e-5


def _pick_tile(dim, target, align):
    """Largest tile t <= target with t % align == 0 and dim % t == 0, else dim."""
    if dim <= target:
        return dim
    if dim % align != 0:
        return dim
    t = (target // align) * align
    while t >= align:
        if dim % t == 0:
            return t
        t -= align
    return dim


# ----------------------------------------------------------------------------
# Kernel 1: tiled dense layer  y = x @ W + b
# ----------------------------------------------------------------------------
def _linear_kernel(x_ref, w_ref, b_ref, o_ref, acc_ref):
    k = pl.program_id(2)

    @pl.when(k == 0)
    def _():
        acc_ref[...] = jnp.zeros_like(acc_ref)

    # Native-dtype MXU issue, f32 accumulation.
    acc_ref[...] += jnp.dot(x_ref[...], w_ref[...],
                            preferred_element_type=jnp.float32)

    @pl.when(k == pl.num_programs(2) - 1)
    def _():
        o_ref[...] = (acc_ref[...] + b_ref[...].astype(jnp.float32)
                      ).astype(o_ref.dtype)


def linear(x2d, w, b, *, tm_target=256, tn_target=256, tk_target=512):
    M, K = x2d.shape
    N = w.shape[1]
    tm = _pick_tile(M, tm_target, 8)
    tn = _pick_tile(N, tn_target, 128)
    tk = _pick_tile(K, tk_target, 128)
    grid = (M // tm, N // tn, K // tk)

    itemsize = x2d.dtype.itemsize
    cost = pl.CostEstimate(
        flops=2 * M * N * K,
        transcendentals=0,
        bytes_accessed=(M * K + K * N + N + M * N) * itemsize)

    return pl.pallas_call(
        _linear_kernel,
        out_shape=jax.ShapeDtypeStruct((M, N), x2d.dtype),
        grid=grid,
        in_specs=[
            pl.BlockSpec((tm, tk), lambda i, j, k: (i, k)),
            pl.BlockSpec((tk, tn), lambda i, j, k: (k, j)),
            pl.BlockSpec((1, tn), lambda i, j, k: (0, j)),   # bias, added on last k only
        ],
        out_specs=pl.BlockSpec((tm, tn), lambda i, j, k: (i, j)),
        scratch_shapes=[pltpu.VMEM((tm, tn), jnp.float32)],
        compiler_params=pltpu.CompilerParams(
            dimension_semantics=("parallel", "parallel", "arbitrary")),
        cost_estimate=cost,
    )(x2d, w, b.reshape(1, N))


# ----------------------------------------------------------------------------
# Kernel 2: attention over (batch, query-tile), all heads packed per block
# ----------------------------------------------------------------------------
def _layernorm_f32(x, gamma, beta):
    x = x.astype(jnp.float32)
    mean = jnp.mean(x, axis=-1, keepdims=True)
    var = jnp.mean((x - mean) ** 2, axis=-1, keepdims=True)
    xn = (x - mean) * jax.lax.rsqrt(var + _LN_EPS)
    return xn * gamma.astype(jnp.float32) + beta.astype(jnp.float32)


def _attn_kernel(qrows_ref, kv_ref, qg_ref, qb_ref, kg_ref, kb_ref, o_ref,
                 *, num_heads):
    # qrows_ref: (1, tq, 3E) query-row slab of the fused QKV output
    # kv_ref:    (1, n, 3E)  full-sequence slab (K and V columns used)
    # o_ref:     (1, tq, E)  lane-dense output in (bs, n, E) layout
    qrows = qrows_ref[0]                       # (tq, 3E)
    kvrows = kv_ref[0]                         # (n, 3E)
    dt = qrows.dtype
    e = qrows.shape[-1] // 3
    hd = e // num_heads

    qg = qg_ref[...]                           # (1, hd) — 1/sqrt(hd) pre-folded
    qb = qb_ref[...]
    kg = kg_ref[...]
    kb = kb_ref[...]

    outs = []
    for h in range(num_heads):                 # static unroll over packed heads
        qh = qrows[:, h * hd:(h + 1) * hd]                 # (tq, hd)
        kh = kvrows[:, e + h * hd: e + (h + 1) * hd]       # (n, hd)
        vh = kvrows[:, 2 * e + h * hd: 2 * e + (h + 1) * hd]

        qh = _layernorm_f32(qh, qg, qb).astype(dt)         # scale already folded in
        kh = _layernorm_f32(kh, kg, kb).astype(dt)

        # scores = q @ k^T (contract head_dim), f32 accumulate
        s = jax.lax.dot_general(qh, kh, (((1,), (1,)), ((), ())),
                                preferred_element_type=jnp.float32)  # (tq, n)
        m = jnp.max(s, axis=-1, keepdims=True)
        p = jnp.exp(s - m)
        denom = jnp.sum(p, axis=-1, keepdims=True)
        p = p * pl.reciprocal(denom, approx=True)

        oh = jnp.dot(p.astype(vh.dtype), vh,
                     preferred_element_type=jnp.float32)             # (tq, hd)
        outs.append(oh)

    o_ref[0] = jnp.concatenate(outs, axis=-1).astype(o_ref.dtype)    # (tq, E)


def attention(qkv, q_gamma, q_beta, k_gamma, k_beta, num_heads, *, tq_target=256):
    # qkv: (bs, n, 3E) with columns laid out as [Q(all heads) | K | V]
    bs, n, e3 = qkv.shape
    e = e3 // 3
    hd = e // num_heads
    tq = _pick_tile(n, tq_target, 8)           # query tiling bounds VMEM to O(tq*n)
    grid = (bs, n // tq)
    # TODO(synk): for very long sequences also tile K/V (flash-style online
    # softmax) instead of keeping the full-sequence K/V slab resident.

    itemsize = qkv.dtype.itemsize
    cost = pl.CostEstimate(
        flops=4 * bs * n * n * e + 10 * bs * n * e,
        transcendentals=bs * num_heads * n * n,
        bytes_accessed=(2 * bs * n * e3 + bs * n * e) * itemsize)

    kernel = functools.partial(_attn_kernel, num_heads=num_heads)
    return pl.pallas_call(
        kernel,
        out_shape=jax.ShapeDtypeStruct((bs, n, e), qkv.dtype),
        grid=grid,
        in_specs=[
            pl.BlockSpec((1, tq, e3), lambda b, qi: (b, qi, 0)),  # query rows
            pl.BlockSpec((1, n, e3), lambda b, qi: (b, 0, 0)),    # full seq (K/V)
            pl.BlockSpec((1, hd), lambda b, qi: (0, 0)),
            pl.BlockSpec((1, hd), lambda b, qi: (0, 0)),
            pl.BlockSpec((1, hd), lambda b, qi: (0, 0)),
            pl.BlockSpec((1, hd), lambda b, qi: (0, 0)),
        ],
        out_specs=pl.BlockSpec((1, tq, e), lambda b, qi: (b, qi, 0)),
        compiler_params=pltpu.CompilerParams(
            dimension_semantics=("parallel", "parallel")),
        cost_estimate=cost,
    )(qkv, qkv,
      q_gamma.reshape(1, hd), q_beta.reshape(1, hd),
      k_gamma.reshape(1, hd), k_beta.reshape(1, hd))


# ----------------------------------------------------------------------------
# Full module forward (glue is free reshapes only; all heavy ops in Pallas)
# ----------------------------------------------------------------------------
def mhsa_forward(x, params, num_heads):
    bs, n, e = x.shape
    hd = e // num_heads
    scale = 1.0 / math.sqrt(float(hd))

    # fused QKV projection (tiled Pallas matmul)
    qkv = linear(x.reshape(bs * n, e), params["qkv_w"], params["qkv_b"])
    qkv = qkv.reshape(bs, n, 3 * e)            # free reshape, no transpose

    # pre-fold 1/sqrt(head_dim) into the q LayerNorm affine (host-side, tiny)
    qg = params["q_ln_g"] * scale
    qb = params["q_ln_b"] * scale

    o = attention(qkv, qg, qb, params["k_ln_g"], params["k_ln_b"], num_heads)
    # o is already (bs, n, e) — no transpose needed before the output projection.

    out = linear(o.reshape(bs * n, e), params["proj_w"], params["proj_b"])
    out = out.reshape(bs, n, e)

    # projection dropout: identity in eval mode
    return out


# ----------------------------------------------------------------------------
# Pure-JAX reference for a sanity check
# ----------------------------------------------------------------------------
def mhsa_reference(x, params, num_heads):
    bs, n, e = x.shape
    hd = e // num_heads
    qkv = x @ params["qkv_w"] + params["qkv_b"]
    qkv = qkv.reshape(bs, n, 3, num_heads, hd).transpose(2, 0, 3, 1, 4)
    q, k, v = qkv[0], qkv[1], qkv[2]

    def ln(z, g, b):
        mu = z.mean(-1, keepdims=True)
        var = ((z - mu) ** 2).mean(-1, keepdims=True)
        return (z - mu) / jnp.sqrt(var + _LN_EPS) * g + b

    q = ln(q, params["q_ln_g"], params["q_ln_b"])
    k = ln(k, params["k_ln_g"], params["k_ln_b"])
    attn = (q @ jnp.swapaxes(k, -2, -1)) * (1.0 / math.sqrt(hd))
    attn = jax.nn.softmax(attn, axis=-1)
    o = (attn @ v).transpose(0, 2, 1, 3).reshape(bs, n, e)
    return o @ params["proj_w"] + params["proj_b"]


if __name__ == "__main__":
    # small shapes consistent with the module
    batch, n_patches, embed_dim, num_heads = 2, 8, 32, 4
    head_dim = embed_dim // num_heads

    key = jax.random.PRNGKey(0)
    ks = jax.random.split(key, 6)

    bound_qkv = 1.0 / math.sqrt(embed_dim)
    params = {
        "qkv_w": jax.random.uniform(ks[0], (embed_dim, 3 * embed_dim),
                                    jnp.float32, -bound_qkv, bound_qkv),
        "qkv_b": jax.random.uniform(ks[1], (3 * embed_dim,),
                                    jnp.float32, -bound_qkv, bound_qkv),
        "q_ln_g": jnp.ones((head_dim,), jnp.float32),
        "q_ln_b": jnp.zeros((head_dim,), jnp.float32),
        "k_ln_g": jnp.ones((head_dim,), jnp.float32),
        "k_ln_b": jnp.zeros((head_dim,), jnp.float32),
        "proj_w": jax.random.uniform(ks[2], (embed_dim, embed_dim),
                                     jnp.float32, -bound_qkv, bound_qkv),
        "proj_b": jax.random.uniform(ks[3], (embed_dim,),
                                     jnp.float32, -bound_qkv, bound_qkv),
    }

    x = jax.random.normal(ks[4], (batch, n_patches, embed_dim), jnp.float32)

    out = jax.jit(lambda x: mhsa_forward(x, params, num_heads))(x)
    out = jax.block_until_ready(out)

    ref = mhsa_reference(x, params, num_heads)
    # tolerance loosened slightly for pl.reciprocal(approx=True) in the softmax
    np.testing.assert_allclose(np.asarray(out), np.asarray(ref),
                               rtol=2e-3, atol=2e-3)
    print("KERNEL_OK")
</pallas_src>

<mosaic_0001>
module attributes {stable_mosaic.version = 11 : i64} {
  func.func @_linear_kernel(%arg0: i32, %arg1: i32, %arg2: i32, %arg3: memref<16x32xf32, #tpu.memory_space<vmem>>, %arg4: memref<32x96xf32, #tpu.memory_space<vmem>>, %arg5: memref<1x96xf32, #tpu.memory_space<vmem>>, %arg6: memref<16x96xf32, #tpu.memory_space<vmem>>, %arg7: memref<16x96xf32, #tpu.memory_space<vmem>>) attributes {dimension_semantics = [#tpu.dimension_semantics<parallel>, #tpu.dimension_semantics<parallel>, #tpu.dimension_semantics<arbitrary>], iteration_bounds = array<i64: 1, 1, 1>, scalar_prefetch = 0 : i64, scratch_operands = 1 : i64, tpu.core_type = #tpu.core_type<tc>, window_params = [{transform_indices = @transform_0, window_bounds = array<i64: 16, 32>}, {transform_indices = @transform_1, window_bounds = array<i64: 32, 96>}, {transform_indices = @transform_2, window_bounds = array<i64: 1, 96>}, {transform_indices = @transform_3, window_bounds = array<i64: 16, 96>}]} {
    %c0_i32 = arith.constant 0 : i32
    %0 = arith.cmpi eq, %arg2, %c0_i32 : i32
    %1 = arith.extui %0 : i1 to i32
    %c0_i32_0 = arith.constant 0 : i32
    %2 = arith.cmpi ne, %1, %c0_i32_0 : i32
    scf.if %2 {
      %cst_10 = arith.constant 0.000000e+00 : f32
      %12 = vector.broadcast %cst_10 : f32 to vector<16x96xf32>
      %c0_11 = arith.constant 0 : index
      %c0_12 = arith.constant 0 : index
      %13 = vector.load %arg7[%c0_11, %c0_12] : memref<16x96xf32, #tpu.memory_space<vmem>>, vector<16x96xf32>
      tpu.vector_store %arg7[%c0_11, %c0_12], %12 {strides = array<i32>} : memref<16x96xf32, #tpu.memory_space<vmem>>, vector<16x96xf32>,
    } else {
    }
    %c0 = arith.constant 0 : index
    %c0_1 = arith.constant 0 : index
    %3 = vector.load %arg7[%c0, %c0_1] : memref<16x96xf32, #tpu.memory_space<vmem>>, vector<16x96xf32>
    %c0_2 = arith.constant 0 : index
    %c0_3 = arith.constant 0 : index
    %4 = vector.load %arg3[%c0_2, %c0_3] : memref<16x32xf32, #tpu.memory_space<vmem>>, vector<16x32xf32>
    %c0_4 = arith.constant 0 : index
    %c0_5 = arith.constant 0 : index
    %5 = vector.load %arg4[%c0_4, %c0_5] : memref<32x96xf32, #tpu.memory_space<vmem>>, vector<32x96xf32>
    %cst = arith.constant dense<0.000000e+00> : vector<16x96xf32>
    %6 = tpu.matmul %4, %5, %cst {dimension_numbers = #tpu.dot_dimension_numbers<[1], [0], [0], [1], [0, 0, 1, 1], [], []>} : vector<16x32xf32>, vector<32x96xf32>, vector<16x96xf32> -> vector<16x96xf32>
    %7 = arith.addf %3, %6 : vector<16x96xf32>
    %c0_6 = arith.constant 0 : index
    %c0_7 = arith.constant 0 : index
    %8 = vector.load %arg7[%c0_6, %c0_7] : memref<16x96xf32, #tpu.memory_space<vmem>>, vector<16x96xf32>
    tpu.vector_store %arg7[%c0_6, %c0_7], %7 {strides = array<i32>} : memref<16x96xf32, #tpu.memory_space<vmem>>, vector<16x96xf32>,
    %c0_i32_8 = arith.constant 0 : i32
    %9 = arith.cmpi eq, %arg2, %c0_i32_8 : i32
    %10 = arith.extui %9 : i1 to i32
    %c0_i32_9 = arith.constant 0 : i32
    %11 = arith.cmpi ne, %10, %c0_i32_9 : i32
    scf.if %11 {
      %c0_10 = arith.constant 0 : index
      %c0_11 = arith.constant 0 : index
      %12 = vector.load %arg7[%c0_10, %c0_11] : memref<16x96xf32, #tpu.memory_space<vmem>>, vector<16x96xf32>
      %c0_12 = arith.constant 0 : index
      %c0_13 = arith.constant 0 : index
      %13 = vector.load %arg5[%c0_12, %c0_13] : memref<1x96xf32, #tpu.memory_space<vmem>>, vector<1x96xf32>
      %14 = vector.broadcast %13 : vector<1x96xf32> to vector<16x96xf32>
      %15 = arith.addf %12, %14 : vector<16x96xf32>
      %c0_14 = arith.constant 0 : index
      %c0_15 = arith.constant 0 : index
      %16 = vector.load %arg6[%c0_14, %c0_15] : memref<16x96xf32, #tpu.memory_space<vmem>>, vector<16x96xf32>
      tpu.vector_store %arg6[%c0_14, %c0_15], %15 {strides = array<i32>} : memref<16x96xf32, #tpu.memory_space<vmem>>, vector<16x96xf32>,
    } else {
    }
    return
  }
  func.func @transform_0(%arg0: i32, %arg1: i32, %arg2: i32) -> (i32, i32) {
    %c0_i32 = arith.constant 0 : i32
    return %arg0, %arg2 : i32, i32
  }
  func.func @transform_1(%arg0: i32, %arg1: i32, %arg2: i32) -> (i32, i32) {
    %c0_i32 = arith.constant 0 : i32
    return %arg2, %arg1 : i32, i32
  }
  func.func @transform_2(%arg0: i32, %arg1: i32, %arg2: i32) -> (i32, i32) {
    %c0_i32 = arith.constant 0 : i32
    %c0_i32_0 = arith.constant 0 : i32
    return %c0_i32, %arg1 : i32, i32
  }
  func.func @transform_3(%arg0: i32, %arg1: i32, %arg2: i32) -> (i32, i32) {
    %c0_i32 = arith.constant 0 : i32
    return %arg0, %arg1 : i32, i32
  }
}

module attributes {stable_mosaic.version = 11 : i64} {
  func.func @_linear_kernel(%arg0: i32, %arg1: i32, %arg2: i32, %arg3: memref<16x32xf32, #tpu.memory_space<vmem>>, %arg4: memref<32x32xf32, #tpu.memory_space<vmem>>, %arg5: memref<1x32xf32, #tpu.memory_space<vmem>>, %arg6: memref<16x32xf32, #tpu.memory_space<vmem>>, %arg7: memref<16x32xf32, #tpu.memory_space<vmem>>) attributes {dimension_semantics = [#tpu.dimension_semantics<parallel>, #tpu.dimension_semantics<parallel>, #tpu.dimension_semantics<arbitrary>], iteration_bounds = array<i64: 1, 1, 1>, scalar_prefetch = 0 : i64, scratch_operands = 1 : i64, tpu.core_type = #tpu.core_type<tc>, window_params = [{transform_indices = @transform_0, window_bounds = array<i64: 16, 32>}, {transform_indices = @transform_1, window_bounds = array<i64: 32, 32>}, {transform_indices = @transform_2, window_bounds = array<i64: 1, 32>}, {transform_indices = @transform_3, window_bounds = array<i64: 16, 32>}]} {
    %c0_i32 = arith.constant 0 : i32
    %0 = arith.cmpi eq, %arg2, %c0_i32 : i32
    %1 = arith.extui %0 : i1 to i32
    %c0_i32_0 = arith.constant 0 : i32
    %2 = arith.cmpi ne, %1, %c0_i32_0 : i32
    scf.if %2 {
      %cst_10 = arith.constant 0.000000e+00 : f32
      %12 = vector.broadcast %cst_10 : f32 to vector<16x32xf32>
      %c0_11 = arith.constant 0 : index
      %c0_12 = arith.constant 0 : index
      %13 = vector.load %arg7[%c0_11, %c0_12] : memref<16x32xf32, #tpu.memory_space<vmem>>, vector<16x32xf32>
      tpu.vector_store %arg7[%c0_11, %c0_12], %12 {strides = array<i32>} : memref<16x32xf32, #tpu.memory_space<vmem>>, vector<16x32xf32>,
    } else {
    }
    %c0 = arith.constant 0 : index
    %c0_1 = arith.constant 0 : index
    %3 = vector.load %arg7[%c0, %c0_1] : memref<16x32xf32, #tpu.memory_space<vmem>>, vector<16x32xf32>
    %c0_2 = arith.constant 0 : index
    %c0_3 = arith.constant 0 : index
    %4 = vector.load %arg3[%c0_2, %c0_3] : memref<16x32xf32, #tpu.memory_space<vmem>>, vector<16x32xf32>
    %c0_4 = arith.constant 0 : index
    %c0_5 = arith.constant 0 : index
    %5 = vector.load %arg4[%c0_4, %c0_5] : memref<32x32xf32, #tpu.memory_space<vmem>>, vector<32x32xf32>
    %cst = arith.constant dense<0.000000e+00> : vector<16x32xf32>
    %6 = tpu.matmul %4, %5, %cst {dimension_numbers = #tpu.dot_dimension_numbers<[1], [0], [0], [1], [0, 0, 1, 1], [], []>} : vector<16x32xf32>, vector<32x32xf32>, vector<16x32xf32> -> vector<16x32xf32>
    %7 = arith.addf %3, %6 : vector<16x32xf32>
    %c0_6 = arith.constant 0 : index
    %c0_7 = arith.constant 0 : index
    %8 = vector.load %arg7[%c0_6, %c0_7] : memref<16x32xf32, #tpu.memory_space<vmem>>, vector<16x32xf32>
    tpu.vector_store %arg7[%c0_6, %c0_7], %7 {strides = array<i32>} : memref<16x32xf32, #tpu.memory_space<vmem>>, vector<16x32xf32>,
    %c0_i32_8 = arith.constant 0 : i32
    %9 = arith.cmpi eq, %arg2, %c0_i32_8 : i32
    %10 = arith.extui %9 : i1 to i32
    %c0_i32_9 = arith.constant 0 : i32
    %11 = arith.cmpi ne, %10, %c0_i32_9 : i32
    scf.if %11 {
      %c0_10 = arith.constant 0 : index
      %c0_11 = arith.constant 0 : index
      %12 = vector.load %arg7[%c0_10, %c0_11] : memref<16x32xf32, #tpu.memory_space<vmem>>, vector<16x32xf32>
      %c0_12 = arith.constant 0 : index
      %c0_13 = arith.constant 0 : index
      %13 = vector.load %arg5[%c0_12, %c0_13] : memref<1x32xf32, #tpu.memory_space<vmem>>, vector<1x32xf32>
      %14 = vector.broadcast %13 : vector<1x32xf32> to vector<16x32xf32>
      %15 = arith.addf %12, %14 : vector<16x32xf32>
      %c0_14 = arith.constant 0 : index
      %c0_15 = arith.constant 0 : index
      %16 = vector.load %arg6[%c0_14, %c0_15] : memref<16x32xf32, #tpu.memory_space<vmem>>, vector<16x32xf32>
      tpu.vector_store %arg6[%c0_14, %c0_15], %15 {strides = array<i32>} : memref<16x32xf32, #tpu.memory_space<vmem>>, vector<16x32xf32>,
    } else {
    }
    return
  }
  func.func @transform_0(%arg0: i32, %arg1: i32, %arg2: i32) -> (i32, i32) {
    %c0_i32 = arith.constant 0 : i32
    return %arg0, %arg2 : i32, i32
  }
  func.func @transform_1(%arg0: i32, %arg1: i32, %arg2: i32) -> (i32, i32) {
    %c0_i32 = arith.constant 0 : i32
    return %arg2, %arg1 : i32, i32
  }
  func.func @transform_2(%arg0: i32, %arg1: i32, %arg2: i32) -> (i32, i32) {
    %c0_i32 = arith.constant 0 : i32
    %c0_i32_0 = arith.constant 0 : i32
    return %c0_i32, %arg1 : i32, i32
  }
  func.func @transform_3(%arg0: i32, %arg1: i32, %arg2: i32) -> (i32, i32) {
    %c0_i32 = arith.constant 0 : i32
    return %arg0, %arg1 : i32, i32
  }
}

module attributes {stable_mosaic.version = 11 : i64} {
  func.func @_attn_kernel(%arg0: i32, %arg1: i32, %arg2: memref<1x8x96xf32, #tpu.memory_space<vmem>>, %arg3: memref<1x8x96xf32, #tpu.memory_space<vmem>>, %arg4: memref<1x8xf32, #tpu.memory_space<vmem>>, %arg5: memref<1x8xf32, #tpu.memory_space<vmem>>, %arg6: memref<1x8xf32, #tpu.memory_space<vmem>>, %arg7: memref<1x8xf32, #tpu.memory_space<vmem>>, %arg8: memref<1x8x32xf32, #tpu.memory_space<vmem>>) attributes {dimension_semantics = [#tpu.dimension_semantics<parallel>, #tpu.dimension_semantics<parallel>], iteration_bounds = array<i64: 2, 1>, scalar_prefetch = 0 : i64, scratch_operands = 0 : i64, tpu.core_type = #tpu.core_type<tc>, window_params = [{transform_indices = @transform_0, window_bounds = array<i64: 1, 8, 96>}, {transform_indices = @transform_1, window_bounds = array<i64: 1, 8, 96>}, {pipeline_mode = #tpu.pipeline_mode<synchronous>, transform_indices = @transform_2, window_bounds = array<i64: 1, 8>}, {pipeline_mode = #tpu.pipeline_mode<synchronous>, transform_indices = @transform_3, window_bounds = array<i64: 1, 8>}, {pipeline_mode = #tpu.pipeline_mode<synchronous>, transform_indices = @transform_4, window_bounds = array<i64: 1, 8>}, {pipeline_mode = #tpu.pipeline_mode<synchronous>, transform_indices = @transform_5, window_bounds = array<i64: 1, 8>}, {transform_indices = @transform_6, window_bounds = array<i64: 1, 8, 32>}]} {
    %c0 = arith.constant 0 : index
    %c0_0 = arith.constant 0 : index
    %c0_1 = arith.constant 0 : index
    %0 = vector.load %arg2[%c0, %c0_0, %c0_1] : memref<1x8x96xf32, #tpu.memory_space<vmem>>, vector<1x8x96xf32>
    %1 = vector.shape_cast %0 : vector<1x8x96xf32> to vector<8x96xf32>
    %c0_2 = arith.constant 0 : index
    %c0_3 = arith.constant 0 : index
    %c0_4 = arith.constant 0 : index
    %2 = vector.load %arg3[%c0_2, %c0_3, %c0_4] : memref<1x8x96xf32, #tpu.memory_space<vmem>>, vector<1x8x96xf32>
    %3 = vector.shape_cast %2 : vector<1x8x96xf32> to vector<8x96xf32>
    %c0_5 = arith.constant 0 : index
    %c0_6 = arith.constant 0 : index
    %4 = vector.load %arg4[%c0_5, %c0_6] : memref<1x8xf32, #tpu.memory_space<vmem>>, vector<1x8xf32>
    %c0_7 = arith.constant 0 : index
    %c0_8 = arith.constant 0 : index
    %5 = vector.load %arg5[%c0_7, %c0_8] : memref<1x8xf32, #tpu.memory_space<vmem>>, vector<1x8xf32>
    %c0_9 = arith.constant 0 : index
    %c0_10 = arith.constant 0 : index
    %6 = vector.load %arg6[%c0_9, %c0_10] : memref<1x8xf32, #tpu.memory_space<vmem>>, vector<1x8xf32>
    %c0_11 = arith.constant 0 : index
    %c0_12 = arith.constant 0 : index
    %7 = vector.load %arg7[%c0_11, %c0_12] : memref<1x8xf32, #tpu.memory_space<vmem>>, vector<1x8xf32>
    %8 = vector.extract_strided_slice %1 {offsets = [0, 0], sizes = [8, 8], strides = [1, 1]} : vector<8x96xf32> to vector<8x8xf32>
    %9 = vector.extract_strided_slice %3 {offsets = [0, 32], sizes = [8, 8], strides = [1, 1]} : vector<8x96xf32> to vector<8x8xf32>
    %10 = vector.extract_strided_slice %3 {offsets = [0, 64], sizes = [8, 8], strides = [1, 1]} : vector<8x96xf32> to vector<8x8xf32>
    %cst = arith.constant dense<0.000000e+00> : vector<8xf32>
    %11 = vector.multi_reduction <add>, %8, %cst [1] : vector<8x8xf32> to vector<8xf32>
    %12 = vector.shape_cast %11 : vector<8xf32> to vector<8x1xf32>
    %cst_13 = arith.constant 8.000000e+00 : f32
    %13 = vector.broadcast %cst_13 : f32 to vector<8x1xf32>
    %14 = arith.divf %12, %13 : vector<8x1xf32>
    %15 = vector.broadcast %14 : vector<8x1xf32> to vector<8x8xf32>
    %16 = arith.subf %8, %15 : vector<8x8xf32>
    %17 = arith.mulf %16, %16 : vector<8x8xf32>
    %cst_14 = arith.constant dense<0.000000e+00> : vector<8xf32>
    %18 = vector.multi_reduction <add>, %17, %cst_14 [1] : vector<8x8xf32> to vector<8xf32>
    %19 = vector.shape_cast %18 : vector<8xf32> to vector<8x1xf32>
    %cst_15 = arith.constant 8.000000e+00 : f32
    %20 = vector.broadcast %cst_15 : f32 to vector<8x1xf32>
    %21 = arith.divf %19, %20 : vector<8x1xf32>
    %22 = vector.broadcast %14 : vector<8x1xf32> to vector<8x8xf32>
    %23 = arith.subf %8, %22 : vector<8x8xf32>
    %cst_16 = arith.constant 9.99999974E-6 : f32
    %24 = vector.broadcast %cst_16 : f32 to vector<8x1xf32>
    %25 = arith.addf %21, %24 : vector<8x1xf32>
    %26 = math.rsqrt %25 : vector<8x1xf32>
    %27 = vector.broadcast %26 : vector<8x1xf32> to vector<8x8xf32>
    %28 = arith.mulf %23, %27 : vector<8x8xf32>
    %29 = vector.broadcast %4 : vector<1x8xf32> to vector<8x8xf32>
    %30 = arith.mulf %28, %29 : vector<8x8xf32>
    %31 = vector.broadcast %5 : vector<1x8xf32> to vector<8x8xf32>
    %32 = arith.addf %30, %31 : vector<8x8xf32>
    %cst_17 = arith.constant dense<0.000000e+00> : vector<8xf32>
    %33 = vector.multi_reduction <add>, %9, %cst_17 [1] : vector<8x8xf32> to vector<8xf32>
    %34 = vector.shape_cast %33 : vector<8xf32> to vector<8x1xf32>
    %cst_18 = arith.constant 8.000000e+00 : f32
    %35 = vector.broadcast %cst_18 : f32 to vector<8x1xf32>
    %36 = arith.divf %34, %35 : vector<8x1xf32>
    %37 = vector.broadcast %36 : vector<8x1xf32> to vector<8x8xf32>
    %38 = arith.subf %9, %37 : vector<8x8xf32>
    %39 = arith.mulf %38, %38 : vector<8x8xf32>
    %cst_19 = arith.constant dense<0.000000e+00> : vector<8xf32>
    %40 = vector.multi_reduction <add>, %39, %cst_19 [1] : vector<8x8xf32> to vector<8xf32>
    %41 = vector.shape_cast %40 : vector<8xf32> to vector<8x1xf32>
    %cst_20 = arith.constant 8.000000e+00 : f32
    %42 = vector.broadcast %cst_20 : f32 to vector<8x1xf32>
    %43 = arith.divf %41, %42 : vector<8x1xf32>
    %44 = vector.broadcast %36 : vector<8x1xf32> to vector<8x8xf32>
    %45 = arith.subf %9, %44 : vector<8x8xf32>
    %cst_21 = arith.constant 9.99999974E-6 : f32
    %46 = vector.broadcast %cst_21 : f32 to vector<8x1xf32>
    %47 = arith.addf %43, %46 : vector<8x1xf32>
    %48 = math.rsqrt %47 : vector<8x1xf32>
    %49 = vector.broadcast %48 : vector<8x1xf32> to vector<8x8xf32>
    %50 = arith.mulf %45, %49 : vector<8x8xf32>
    %51 = vector.broadcast %6 : vector<1x8xf32> to vector<8x8xf32>
    %52 = arith.mulf %50, %51 : vector<8x8xf32>
    %53 = vector.broadcast %7 : vector<1x8xf32> to vector<8x8xf32>
    %54 = arith.addf %52, %53 : vector<8x8xf32>
    %cst_22 = arith.constant dense<0.000000e+00> : vector<8x8xf32>
    %55 = tpu.matmul %32, %54, %cst_22 {dimension_numbers = #tpu.dot_dimension_numbers<[1], [1], [0], [0], [0, 0, 1, 0], [], []>} : vector<8x8xf32>, vector<8x8xf32>, vector<8x8xf32> -> vector<8x8xf32>
    %cst_23 = arith.constant dense<0xFF800000> : vector<8xf32>
    %56 = vector.multi_reduction <maximumf>, %55, %cst_23 [1] : vector<8x8xf32> to vector<8xf32>
    %57 = vector.shape_cast %56 : vector<8xf32> to vector<8x1xf32>
    %58 = vector.broadcast %57 : vector<8x1xf32> to vector<8x8xf32>
    %59 = arith.subf %55, %58 : vector<8x8xf32>
    %60 = math.exp %59 : vector<8x8xf32>
    %cst_24 = arith.constant dense<0.000000e+00> : vector<8xf32>
    %61 = vector.multi_reduction <add>, %60, %cst_24 [1] : vector<8x8xf32> to vector<8xf32>
    %62 = vector.shape_cast %61 : vector<8xf32> to vector<8x1xf32>
    %63 = tpu.reciprocal %62 {approx = true} : vector<8x1xf32> -> vector<8x1xf32>
    %64 = vector.broadcast %63 : vector<8x1xf32> to vector<8x8xf32>
    %65 = arith.mulf %60, %64 : vector<8x8xf32>
    %cst_25 = arith.constant dense<0.000000e+00> : vector<8x8xf32>
    %66 = tpu.matmul %65, %10, %cst_25 {dimension_numbers = #tpu.dot_dimension_numbers<[1], [0], [0], [1], [0, 0, 1, 1], [], []>} : vector<8x8xf32>, vector<8x8xf32>, vector<8x8xf32> -> vector<8x8xf32>
    %67 = vector.extract_strided_slice %1 {offsets = [0, 8], sizes = [8, 8], strides = [1, 1]} : vector<8x96xf32> to vector<8x8xf32>
    %68 = vector.extract_strided_slice %3 {offsets = [0, 40], sizes = [8, 8], strides = [1, 1]} : vector<8x96xf32> to vector<8x8xf32>
    %69 = vector.extract_strided_slice %3 {offsets = [0, 72], sizes = [8, 8], strides = [1, 1]} : vector<8x96xf32> to vector<8x8xf32>
    %cst_26 = arith.constant dense<0.000000e+00> : vector<8xf32>
    %70 = vector.multi_reduction <add>, %67, %cst_26 [1] : vector<8x8xf32> to vector<8xf32>
    %71 = vector.shape_cast %70 : vector<8xf32> to vector<8x1xf32>
    %cst_27 = arith.constant 8.000000e+00 : f32
    %72 = vector.broadcast %cst_27 : f32 to vector<8x1xf32>
    %73 = arith.divf %71, %72 : vector<8x1xf32>
    %74 = vector.broadcast %73 : vector<8x1xf32> to vector<8x8xf32>
    %75 = arith.subf %67, %74 : vector<8x8xf32>
    %76 = arith.mulf %75, %75 : vector<8x8xf32>
    %cst_28 = arith.constant dense<0.000000e+00> : vector<8xf32>
    %77 = vector.multi_reduction <add>, %76, %cst_28 [1] : vector<8x8xf32> to vector<8xf32>
    %78 = vector.shape_cast %77 : vector<8xf32> to vector<8x1xf32>
    %cst_29 = arith.constant 8.000000e+00 : f32
    %79 = vector.broadcast %cst_29 : f32 to vector<8x1xf32>
    %80 = arith.divf %78, %79 : vector<8x1xf32>
    %81 = vector.broadcast %73 : vector<8x1xf32> to vector<8x8xf32>
    %82 = arith.subf %67, %81 : vector<8x8xf32>
    %cst_30 = arith.constant 9.99999974E-6 : f32
    %83 = vector.broadcast %cst_30 : f32 to vector<8x1xf32>
    %84 = arith.addf %80, %83 : vector<8x1xf32>
    %85 = math.rsqrt %84 : vector<8x1xf32>
    %86 = vector.broadcast %85 : vector<8x1xf32> to vector<8x8xf32>
    %87 = arith.mulf %82, %86 : vector<8x8xf32>
    %88 = vector.broadcast %4 : vector<1x8xf32> to vector<8x8xf32>
    %89 = arith.mulf %87, %88 : vector<8x8xf32>
    %90 = vector.broadcast %5 : vector<1x8xf32> to vector<8x8xf32>
    %91 = arith.addf %89, %90 : vector<8x8xf32>
    %cst_31 = arith.constant dense<0.000000e+00> : vector<8xf32>
    %92 = vector.multi_reduction <add>, %68, %cst_31 [1] : vector<8x8xf32> to vector<8xf32>
    %93 = vector.shape_cast %92 : vector<8xf32> to vector<8x1xf32>
    %cst_32 = arith.constant 8.000000e+00 : f32
    %94 = vector.broadcast %cst_32 : f32 to vector<8x1xf32>
    %95 = arith.divf %93, %94 : vector<8x1xf32>
    %96 = vector.broadcast %95 : vector<8x1xf32> to vector<8x8xf32>
    %97 = arith.subf %68, %96 : vector<8x8xf32>
    %98 = arith.mulf %97, %97 : vector<8x8xf32>
    %cst_33 = arith.constant dense<0.000000e+00> : vector<8xf32>
    %99 = vector.multi_reduction <add>, %98, %cst_33 [1] : vector<8x8xf32> to vector<8xf32>
    %100 = vector.shape_cast %99 : vector<8xf32> to vector<8x1xf32>
    %cst_34 = arith.constant 8.000000e+00 : f32
    %101 = vector.broadcast %cst_34 : f32 to vector<8x1xf32>
    %102 = arith.divf %100, %101 : vector<8x1xf32>
    %103 = vector.broadcast %95 : vector<8x1xf32> to vector<8x8xf32>
    %104 = arith.subf %68, %103 : vector<8x8xf32>
    %cst_35 = arith.constant 9.99999974E-6 : f32
    %105 = vector.broadcast %cst_35 : f32 to vector<8x1xf32>
    %106 = arith.addf %102, %105 : vector<8x1xf32>
    %107 = math.rsqrt %106 : vector<8x1xf32>
    %108 = vector.broadcast %107 : vector<8x1xf32> to vector<8x8xf32>
    %109 = arith.mulf %104, %108 : vector<8x8xf32>
    %110 = vector.broadcast %6 : vector<1x8xf32> to vector<8x8xf32>
    %111 = arith.mulf %109, %110 : vector<8x8xf32>
    %112 = vector.broadcast %7 : vector<1x8xf32> to vector<8x8xf32>
    %113 = arith.addf %111, %112 : vector<8x8xf32>
    %cst_36 = arith.constant dense<0.000000e+00> : vector<8x8xf32>
    %114 = tpu.matmul %91, %113, %cst_36 {dimension_numbers = #tpu.dot_dimension_numbers<[1], [1], [0], [0], [0, 0, 1, 0], [], []>} : vector<8x8xf32>, vector<8x8xf32>, vector<8x8xf32> -> vector<8x8xf32>
    %cst_37 = arith.constant dense<0xFF800000> : vector<8xf32>
    %115 = vector.multi_reduction <maximumf>, %114, %cst_37 [1] : vector<8x8xf32> to vector<8xf32>
    %116 = vector.shape_cast %115 : vector<8xf32> to vector<8x1xf32>
    %117 = vector.broadcast %116 : vector<8x1xf32> to vector<8x8xf32>
    %118 = arith.subf %114, %117 : vector<8x8xf32>
    %119 = math.exp %118 : vector<8x8xf32>
    %cst_38 = arith.constant dense<0.000000e+00> : vector<8xf32>
    %120 = vector.multi_reduction <add>, %119, %cst_38 [1] : vector<8x8xf32> to vector<8xf32>
    %121 = vector.shape_cast %120 : vector<8xf32> to vector<8x1xf32>
    %122 = tpu.reciprocal %121 {approx = true} : vector<8x1xf32> -> vector<8x1xf32>
    %123 = vector.broadcast %122 : vector<8x1xf32> to vector<8x8xf32>
    %124 = arith.mulf %119, %123 : vector<8x8xf32>
    %cst_39 = arith.constant dense<0.000000e+00> : vector<8x8xf32>
    %125 = tpu.matmul %124, %69, %cst_39 {dimension_numbers = #tpu.dot_dimension_numbers<[1], [0], [0], [1], [0, 0, 1, 1], [], []>} : vector<8x8xf32>, vector<8x8xf32>, vector<8x8xf32> -> vector<8x8xf32>
    %126 = vector.extract_strided_slice %1 {offsets = [0, 16], sizes = [8, 8], strides = [1, 1]} : vector<8x96xf32> to vector<8x8xf32>
    %127 = vector.extract_strided_slice %3 {offsets = [0, 48], sizes = [8, 8], strides = [1, 1]} : vector<8x96xf32> to vector<8x8xf32>
    %128 = vector.extract_strided_slice %3 {offsets = [0, 80], sizes = [8, 8], strides = [1, 1]} : vector<8x96xf32> to vector<8x8xf32>
    %cst_40 = arith.constant dense<0.000000e+00> : vector<8xf32>
    %129 = vector.multi_reduction <add>, %126, %cst_40 [1] : vector<8x8xf32> to vector<8xf32>
    %130 = vector.shape_cast %129 : vector<8xf32> to vector<8x1xf32>
    %cst_41 = arith.constant 8.000000e+00 : f32
    %131 = vector.broadcast %cst_41 : f32 to vector<8x1xf32>
    %132 = arith.divf %130, %131 : vector<8x1xf32>
    %133 = vector.broadcast %132 : vector<8x1xf32> to vector<8x8xf32>
    %134 = arith.subf %126, %133 : vector<8x8xf32>
    %135 = arith.mulf %134, %134 : vector<8x8xf32>
    %cst_42 = arith.constant dense<0.000000e+00> : vector<8xf32>
    %136 = vector.multi_reduction <add>, %135, %cst_42 [1] : vector<8x8xf32> to vector<8xf32>
    %137 = vector.shape_cast %136 : vector<8xf32> to vector<8x1xf32>
    %cst_43 = arith.constant 8.000000e+00 : f32
    %138 = vector.broadcast %cst_43 : f32 to vector<8x1xf32>
    %139 = arith.divf %137, %138 : vector<8x1xf32>
    %140 = vector.broadcast %132 : vector<8x1xf32> to vector<8x8xf32>
    %141 = arith.subf %126, %140 : vector<8x8xf32>
    %cst_44 = arith.constant 9.99999974E-6 : f32
    %142 = vector.broadcast %cst_44 : f32 to vector<8x1xf32>
    %143 = arith.addf %139, %142 : vector<8x1xf32>
    %144 = math.rsqrt %143 : vector<8x1xf32>
    %145 = vector.broadcast %144 : vector<8x1xf32> to vector<8x8xf32>
    %146 = arith.mulf %141, %145 : vector<8x8xf32>
    %147 = vector.broadcast %4 : vector<1x8xf32> to vector<8x8xf32>
    %148 = arith.mulf %146, %147 : vector<8x8xf32>
    %149 = vector.broadcast %5 : vector<1x8xf32> to vector<8x8xf32>
    %150 = arith.addf %148, %149 : vector<8x8xf32>
    %cst_45 = arith.constant dense<0.000000e+00> : vector<8xf32>
    %151 = vector.multi_reduction <add>, %127, %cst_45 [1] : vector<8x8xf32> to vector<8xf32>
    %152 = vector.shape_cast %151 : vector<8xf32> to vector<8x1xf32>
    %cst_46 = arith.constant 8.000000e+00 : f32
    %153 = vector.broadcast %cst_46 : f32 to vector<8x1xf32>
    %154 = arith.divf %152, %153 : vector<8x1xf32>
    %155 = vector.broadcast %154 : vector<8x1xf32> to vector<8x8xf32>
    %156 = arith.subf %127, %155 : vector<8x8xf32>
    %157 = arith.mulf %156, %156 : vector<8x8xf32>
    %cst_47 = arith.constant dense<0.000000e+00> : vector<8xf32>
    %158 = vector.multi_reduction <add>, %157, %cst_47 [1] : vector<8x8xf32> to vector<8xf32>
    %159 = vector.shape_cast %158 : vector<8xf32> to vector<8x1xf32>
    %cst_48 = arith.constant 8.000000e+00 : f32
    %160 = vector.broadcast %cst_48 : f32 to vector<8x1xf32>
    %161 = arith.divf %159, %160 : vector<8x1xf32>
    %162 = vector.broadcast %154 : vector<8x1xf32> to vector<8x8xf32>
    %163 = arith.subf %127, %162 : vector<8x8xf32>
    %cst_49 = arith.constant 9.99999974E-6 : f32
    %164 = vector.broadcast %cst_49 : f32 to vector<8x1xf32>
    %165 = arith.addf %161, %164 : vector<8x1xf32>
    %166 = math.rsqrt %165 : vector<8x1xf32>
    %167 = vector.broadcast %166 : vector<8x1xf32> to vector<8x8xf32>
    %168 = arith.mulf %163, %167 : vector<8x8xf32>
    %169 = vector.broadcast %6 : vector<1x8xf32> to vector<8x8xf32>
    %170 = arith.mulf %168, %169 : vector<8x8xf32>
    %171 = vector.broadcast %7 : vector<1x8xf32> to vector<8x8xf32>
    %172 = arith.addf %170, %171 : vector<8x8xf32>
    %cst_50 = arith.constant dense<0.000000e+00> : vector<8x8xf32>
    %173 = tpu.matmul %150, %172, %cst_50 {dimension_numbers = #tpu.dot_dimension_numbers<[1], [1], [0], [0], [0, 0, 1, 0], [], []>} : vector<8x8xf32>, vector<8x8xf32>, vector<8x8xf32> -> vector<8x8xf32>
    %cst_51 = arith.constant dense<0xFF800000> : vector<8xf32>
    %174 = vector.multi_reduction <maximumf>, %173, %cst_51 [1] : vector<8x8xf32> to vector<8xf32>
    %175 = vector.shape_cast %174 : vector<8xf32> to vector<8x1xf32>
    %176 = vector.broadcast %175 : vector<8x1xf32> to vector<8x8xf32>
    %177 = arith.subf %173, %176 : vector<8x8xf32>
    %178 = math.exp %177 : vector<8x8xf32>
    %cst_52 = arith.constant dense<0.000000e+00> : vector<8xf32>
    %179 = vector.multi_reduction <add>, %178, %cst_52 [1] : vector<8x8xf32> to vector<8xf32>
    %180 = vector.shape_cast %179 : vector<8xf32> to vector<8x1xf32>
    %181 = tpu.reciprocal %180 {approx = true} : vector<8x1xf32> -> vector<8x1xf32>
    %182 = vector.broadcast %181 : vector<8x1xf32> to vector<8x8xf32>
    %183 = arith.mulf %178, %182 : vector<8x8xf32>
    %cst_53 = arith.constant dense<0.000000e+00> : vector<8x8xf32>
    %184 = tpu.matmul %183, %128, %cst_53 {dimension_numbers = #tpu.dot_dimension_numbers<[1], [0], [0], [1], [0, 0, 1, 1], [], []>} : vector<8x8xf32>, vector<8x8xf32>, vector<8x8xf32> -> vector<8x8xf32>
    %185 = vector.extract_strided_slice %1 {offsets = [0, 24], sizes = [8, 8], strides = [1, 1]} : vector<8x96xf32> to vector<8x8xf32>
    %186 = vector.extract_strided_slice %3 {offsets = [0, 56], sizes = [8, 8], strides = [1, 1]} : vector<8x96xf32> to vector<8x8xf32>
    %187 = vector.extract_strided_slice %3 {offsets = [0, 88], sizes = [8, 8], strides = [1, 1]} : vector<8x96xf32> to vector<8x8xf32>
    %cst_54 = arith.constant dense<0.000000e+00> : vector<8xf32>
    %188 = vector.multi_reduction <add>, %185, %cst_54 [1] : vector<8x8xf32> to vector<8xf32>
    %189 = vector.shape_cast %188 : vector<8xf32> to vector<8x1xf32>
    %cst_55 = arith.constant 8.000000e+00 : f32
    %190 = vector.broadcast %cst_55 : f32 to vector<8x1xf32>
    %191 = arith.divf %189, %190 : vector<8x1xf32>
    %192 = vector.broadcast %191 : vector<8x1xf32> to vector<8x8xf32>
    %193 = arith.subf %185, %192 : vector<8x8xf32>
    %194 = arith.mulf %193, %193 : vector<8x8xf32>
    %cst_56 = arith.constant dense<0.000000e+00> : vector<8xf32>
    %195 = vector.multi_reduction <add>, %194, %cst_56 [1] : vector<8x8xf32> to vector<8xf32>
    %196 = vector.shape_cast %195 : vector<8xf32> to vector<8x1xf32>
    %cst_57 = arith.constant 8.000000e+00 : f32
    %197 = vector.broadcast %cst_57 : f32 to vector<8x1xf32>
    %198 = arith.divf %196, %197 : vector<8x1xf32>
    %199 = vector.broadcast %191 : vector<8x1xf32> to vector<8x8xf32>
    %200 = arith.subf %185, %199 : vector<8x8xf32>
    %cst_58 = arith.constant 9.99999974E-6 : f32
    %201 = vector.broadcast %cst_58 : f32 to vector<8x1xf32>
    %202 = arith.addf %198, %201 : vector<8x1xf32>
    %203 = math.rsqrt %202 : vector<8x1xf32>
    %204 = vector.broadcast %203 : vector<8x1xf32> to vector<8x8xf32>
    %205 = arith.mulf %200, %204 : vector<8x8xf32>
    %206 = vector.broadcast %4 : vector<1x8xf32> to vector<8x8xf32>
    %207 = arith.mulf %205, %206 : vector<8x8xf32>
    %208 = vector.broadcast %5 : vector<1x8xf32> to vector<8x8xf32>
    %209 = arith.addf %207, %208 : vector<8x8xf32>
    %cst_59 = arith.constant dense<0.000000e+00> : vector<8xf32>
    %210 = vector.multi_reduction <add>, %186, %cst_59 [1] : vector<8x8xf32> to vector<8xf32>
    %211 = vector.shape_cast %210 : vector<8xf32> to vector<8x1xf32>
    %cst_60 = arith.constant 8.000000e+00 : f32
    %212 = vector.broadcast %cst_60 : f32 to vector<8x1xf32>
    %213 = arith.divf %211, %212 : vector<8x1xf32>
    %214 = vector.broadcast %213 : vector<8x1xf32> to vector<8x8xf32>
    %215 = arith.subf %186, %214 : vector<8x8xf32>
    %216 = arith.mulf %215, %215 : vector<8x8xf32>
    %cst_61 = arith.constant dense<0.000000e+00> : vector<8xf32>
    %217 = vector.multi_reduction <add>, %216, %cst_61 [1] : vector<8x8xf32> to vector<8xf32>
    %218 = vector.shape_cast %217 : vector<8xf32> to vector<8x1xf32>
    %cst_62 = arith.constant 8.000000e+00 : f32
    %219 = vector.broadcast %cst_62 : f32 to vector<8x1xf32>
    %220 = arith.divf %218, %219 : vector<8x1xf32>
    %221 = vector.broadcast %213 : vector<8x1xf32> to vector<8x8xf32>
    %222 = arith.subf %186, %221 : vector<8x8xf32>
    %cst_63 = arith.constant 9.99999974E-6 : f32
    %223 = vector.broadcast %cst_63 : f32 to vector<8x1xf32>
    %224 = arith.addf %220, %223 : vector<8x1xf32>
    %225 = math.rsqrt %224 : vector<8x1xf32>
    %226 = vector.broadcast %225 : vector<8x1xf32> to vector<8x8xf32>
    %227 = arith.mulf %222, %226 : vector<8x8xf32>
    %228 = vector.broadcast %6 : vector<1x8xf32> to vector<8x8xf32>
    %229 = arith.mulf %227, %228 : vector<8x8xf32>
    %230 = vector.broadcast %7 : vector<1x8xf32> to vector<8x8xf32>
    %231 = arith.addf %229, %230 : vector<8x8xf32>
    %cst_64 = arith.constant dense<0.000000e+00> : vector<8x8xf32>
    %232 = tpu.matmul %209, %231, %cst_64 {dimension_numbers = #tpu.dot_dimension_numbers<[1], [1], [0], [0], [0, 0, 1, 0], [], []>} : vector<8x8xf32>, vector<8x8xf32>, vector<8x8xf32> -> vector<8x8xf32>
    %cst_65 = arith.constant dense<0xFF800000> : vector<8xf32>
    %233 = vector.multi_reduction <maximumf>, %232, %cst_65 [1] : vector<8x8xf32> to vector<8xf32>
    %234 = vector.shape_cast %233 : vector<8xf32> to vector<8x1xf32>
    %235 = vector.broadcast %234 : vector<8x1xf32> to vector<8x8xf32>
    %236 = arith.subf %232, %235 : vector<8x8xf32>
    %237 = math.exp %236 : vector<8x8xf32>
    %cst_66 = arith.constant dense<0.000000e+00> : vector<8xf32>
    %238 = vector.multi_reduction <add>, %237, %cst_66 [1] : vector<8x8xf32> to vector<8xf32>
    %239 = vector.shape_cast %238 : vector<8xf32> to vector<8x1xf32>
    %240 = tpu.reciprocal %239 {approx = true} : vector<8x1xf32> -> vector<8x1xf32>
    %241 = vector.broadcast %240 : vector<8x1xf32> to vector<8x8xf32>
    %242 = arith.mulf %237, %241 : vector<8x8xf32>
    %cst_67 = arith.constant dense<0.000000e+00> : vector<8x8xf32>
    %243 = tpu.matmul %242, %187, %cst_67 {dimension_numbers = #tpu.dot_dimension_numbers<[1], [0], [0], [1], [0, 0, 1, 1], [], []>} : vector<8x8xf32>, vector<8x8xf32>, vector<8x8xf32> -> vector<8x8xf32>
    %244 = tpu.concatenate %66, %125, %184, %243 in 1 : vector<8x8xf32>, vector<8x8xf32>, vector<8x8xf32>, vector<8x8xf32> -> vector<8x32xf32>
    %c0_68 = arith.constant 0 : index
    %c0_69 = arith.constant 0 : index
    %c0_70 = arith.constant 0 : index
    %245 = vector.load %arg8[%c0_68, %c0_69, %c0_70] : memref<1x8x32xf32, #tpu.memory_space<vmem>>, vector<1x8x32xf32>
    %246 = vector.shape_cast %245 : vector<1x8x32xf32> to vector<8x32xf32>
    %247 = vector.shape_cast %244 : vector<8x32xf32> to vector<1x8x32xf32>
    tpu.vector_store %arg8[%c0_68, %c0_69, %c0_70], %247 {strides = array<i32>} : memref<1x8x32xf32, #tpu.memory_space<vmem>>, vector<1x8x32xf32>,
    return
  }
  func.func @transform_0(%arg0: i32, %arg1: i32) -> (i32, i32, i32) {
    %c0_i32 = arith.constant 0 : i32
    %c0_i32_0 = arith.constant 0 : i32
    return %arg0, %arg1, %c0_i32 : i32, i32, i32
  }
  func.func @transform_1(%arg0: i32, %arg1: i32) -> (i32, i32, i32) {
    %c0_i32 = arith.constant 0 : i32
    %c0_i32_0 = arith.constant 0 : i32
    %c0_i32_1 = arith.constant 0 : i32
    return %arg0, %c0_i32, %c0_i32_0 : i32, i32, i32
  }
  func.func @transform_2(%arg0: i32, %arg1: i32) -> (i32, i32) {
    %c0_i32 = arith.constant 0 : i32
    %c0_i32_0 = arith.constant 0 : i32
    %c0_i32_1 = arith.constant 0 : i32
    return %c0_i32, %c0_i32_0 : i32, i32
  }
  func.func @transform_3(%arg0: i32, %arg1: i32) -> (i32, i32) {
    %c0_i32 = arith.constant 0 : i32
    %c0_i32_0 = arith.constant 0 : i32
    %c0_i32_1 = arith.constant 0 : i32
    return %c0_i32, %c0_i32_0 : i32, i32
  }
  func.func @transform_4(%arg0: i32, %arg1: i32) -> (i32, i32) {
    %c0_i32 = arith.constant 0 : i32
    %c0_i32_0 = arith.constant 0 : i32
    %c0_i32_1 = arith.constant 0 : i32
    return %c0_i32, %c0_i32_0 : i32, i32
  }
  func.func @transform_5(%arg0: i32, %arg1: i32) -> (i32, i32) {
    %c0_i32 = arith.constant 0 : i32
    %c0_i32_0 = arith.constant 0 : i32
    %c0_i32_1 = arith.constant 0 : i32
    return %c0_i32, %c0_i32_0 : i32, i32
  }
  func.func @transform_6(%arg0: i32, %arg1: i32) -> (i32, i32, i32) {
    %c0_i32 = arith.constant 0 : i32
    %c0_i32_0 = arith.constant 0 : i32
    return %arg0, %arg1, %c0_i32 : i32, i32, i32
  }
}

</mosaic_0001>

<llo_original>
// kernel: _lambda_.5
$region0: #{_lambda_.5}
  #allocation0 [shape = 'u32[]', space=smem, size = 0x4, offset = 0x4, fixed_abs, tag = 'smem constant byte address 0x4 - core index']
  #allocation1 [shape = 'u32[144,128]{1,0:T(1,128)}', space=vmem, size = 0x12000, scoped, tag = 'internal scratch']
  #allocation2 [shape = 'f32[16,32]{1,0:T(8,128)}', space=vmem, size = 0x2000, scoped, tag = 'scratch operand']
  %s0 = inlined_call_operand.vmem [shape: f32[16,32], index: 0, kind: input, shape index: {}]
  %s1 = inlined_call_operand.vmem [shape: f32[32,32], index: 1, kind: input, shape index: {}]
  %s2 = inlined_call_operand.vmem [shape: f32[1,32], index: 2, kind: input, shape index: {}]
  %s3 = inlined_call_operand.hbm [shape: f32[16,32], index: 3, kind: output, shape index: {}]
  %s4 = sld [smem:[#allocation0]]
  $region30: #{_lambda_.5} parent=0
    _
  %s6 = ssub.s32 1, %s4
  %s7 = scalar_select 0, %s6, %s4
  $region1: #{_lambda_.5} parent=0
    #allocation3 [shape = 'u8[8192]{0}', space=vmem, size = 0x2000, scoped, tag = 'output window, operand 0, single buffered']
    #allocation4 [shape = 's32[1]{0}', space=sflag, size = 0x4, scoped, tag = 'scoped memory for _lambda_.5']
    %8 = vsyncpa [#allocation4], 0
    // Predicated region
    $region2: #{_lambda_.5} parent=1 // pred_check
      _
    $region3: #{_lambda_.5} parent=1 // pred_check_branch
      %10 = sbr.rel (0) target = $region5
    $region4: #{_lambda_.5} parent=1 // pred_region
      _
    $region5: #{_lambda_.5} parent=1 // pred_fallthru
      _
    // Predicated region
    $region6: #{_lambda_.5} parent=1 // pred_check
      _
    $region7: #{_lambda_.5} parent=1 // pred_check_branch
      %12 = sbr.rel (0) target = $region9
    $region8: #{_lambda_.5} parent=1 // pred_region
      _
    $region9: #{_lambda_.5} parent=1 // pred_fallthru
      _
    // Predicated region
    $region10: #{_lambda_.5} parent=1 // pred_check
      _
    $region11: #{_lambda_.5} parent=1 // pred_check_branch
      %14 = sbr.rel (0) target = $region13
    $region12: #{_lambda_.5} parent=1 // pred_region
      _
    $region13: #{_lambda_.5} parent=1 // pred_fallthru
      _
    %p15 = scmp.eq.s32.totalorder 0, 0
    // Predicated region
    $region14: #{_lambda_.5} parent=1 // pred_check
      %p16 = pneg %p15
    $region15: #{_lambda_.5} parent=1 // pred_check_branch
      %18 = sbr.rel (%p16) target = $region17
    $region16: #{_lambda_.5} parent=1 // pred_region
      %vm19 = vcmask 261120
      %20 = vst.msk [vmem:[#allocation2] sm:$0xff] %vm19, 0.0
      %21 = vst.msk [vmem:[#allocation2 + $0x8] sm:$0xff] %vm19, 0.0
    $region17: #{_lambda_.5} parent=1 // pred_fallthru
      _
    %v22 = vld [vmem:[#allocation2] sm:$0xff]
    %v23 = vld [vmem:[#allocation2 + $0x8] sm:$0xff]
    %v24 = vld [vmem:[%s0] sm:$0xff]
    %v25 = vld [vmem:[%s0 + $0x8] sm:$0xff]
    %v26 = vld [vmem:[%s1] sm:$0xff]
    %v27 = vld [vmem:[%s1 + $0x8] sm:$0xff]
    %v28 = vld [vmem:[%s1 + $0x10] sm:$0xff]
    %v29 = vld [vmem:[%s1 + $0x18] sm:$0xff]
    %vm30 = vcmask 261120
    %v32 = vsel %vm30, %v24, 0
    %v35 = vsel %vm30, %v25, 0
    %37 = vmatprep.subr.mxu0 0.0
    %38 = vmatpush1.msra.mxu0 %v26
    %39 = vmatprep.subr.mxu0 0.0
    %40 = vmatpush1.msra.mxu0 %v27
    %41 = vmatprep.subr.mxu0 0.0
    %42 = vmatpush1.msra.mxu0 %v28
    %43 = vmatprep.subr.mxu0 0.0
    %44 = vmatpush1.msra.mxu0 %v29
    %45 = vmatprep.subr.mxu0 0.0
    %46 = vmatpush1.msra.mxu0 0.0
    %47 = vmatprep.subr.mxu0 0.0
    %48 = vmatpush1.msra.mxu0 0.0
    %49 = vmatprep.subr.mxu0 0.0
    %50 = vmatpush1.msra.mxu0 0.0
    %51 = vmatprep.subr.mxu0 0.0
    %52 = vmatpush1.msra.mxu0 0.0
    %53 = vmatprep.subr.mxu0 0.0
    %54 = vmatpush1.msra.mxu0 0.0
    %55 = vmatprep.subr.mxu0 0.0
    %56 = vmatpush1.msra.mxu0 0.0
    %57 = vmatprep.subr.mxu0 0.0
    %58 = vmatpush1.msra.mxu0 0.0
    %59 = vmatprep.subr.mxu0 0.0
    %60 = vmatpush1.msra.mxu0 0.0
    %61 = vmatprep.subr.mxu0 0.0
    %62 = vmatpush1.msra.mxu0 0.0
    %63 = vmatprep.subr.mxu0 0.0
    %64 = vmatpush1.msra.mxu0 0.0
    %65 = vmatprep.subr.mxu0 0.0
    %66 = vmatpush1.msra.mxu0 0.0
    %67 = vmatprep.subr.mxu0 0.0
    %68 = vmatpush1.msra.mxu0 0.0
    %69 = vmatprep.subr.mxu0 0.0
    %70 = vmatpush1.msra.mxu0 0.0
    %71 = vmatprep.subr.mxu0 0.0
    %72 = vmatpush1.msra.mxu0 0.0
    %73 = vmatprep.subr.mxu0 0.0
    %74 = vmatpush1.msra.mxu0 0.0
    %75 = vmatprep.subr.mxu0 0.0
    %76 = vmatpush1.msra.mxu0 0.0
    %77 = vmatprep.subr.mxu0 0.0
    %78 = vmatpush1.msra.mxu0 0.0
    %79 = vmatprep.subr.mxu0 0.0
    %80 = vmatpush1.msra.mxu0 0.0
    %81 = vmatprep.subr.mxu0 0.0
    %82 = vmatpush1.msra.mxu0 0.0
    %83 = vmatprep.subr.mxu0 0.0
    %84 = vmatpush1.msra.mxu0 0.0
    %85 = vmatprep.subr.mxu0 0.0
    %86 = vmatpush1.msra.mxu0 0.0
    %87 = vmatprep.subr.mxu0 0.0
    %88 = vmatpush1.msra.mxu0 0.0
    %89 = vmatprep.subr.mxu0 0.0
    %90 = vmatpush1.msra.mxu0 0.0
    %91 = vmatprep.subr.mxu0 0.0
    %92 = vmatpush1.msra.mxu0 0.0
    %93 = vmatprep.subr.mxu0 0.0
    %94 = vmatpush1.msra.mxu0 0.0
    %95 = vmatprep.subr.mxu0 0.0
    %96 = vmatpush1.msra.mxu0 0.0
    %97 = vmatprep.subr.mxu0 0.0
    %98 = vmatpush1.msra.mxu0 0.0
    %99 = vmatprep.subr.mxu0 0.0
    %100 = vmatpush1.msra.mxu0 0.0
    %101 = vmatprep.mubr.f32.mxu0 0.0
    %102 = vmatmul.mubr.f32.gmra.mrb[0].mxu0 %v32
    %v103 = vpop.f32.mrb[0].mxu0
    %v104 = vadd.f32 0.0, %v103
    %v105 = vpop.f32.mrb[0].mxu0
    %106 = vmatprep.mubr.f32.mxu0 0.0
    %107 = vmatmul.mubr.f32.gmra.mrb[0].mxu0 %v35
    %v108 = vpop.f32.mrb[0].mxu0
    %v109 = vadd.f32 0.0, %v108
    %v110 = vpop.f32.mrb[0].mxu0
    %111 = vdwg.mxu0
    %v112 = vadd.f32 %v22, %v104
    %v113 = vadd.f32 %v23, %v109
    %114 = vst.msk [vmem:[#allocation2] sm:$0xff] %vm30, %v112
    %115 = vst.msk [vmem:[#allocation2 + $0x8] sm:$0xff] %vm30, %v113
    // Predicated region
    $region18: #{_lambda_.5} parent=1 // pred_check
      %p116 = pneg %p15
    $region19: #{_lambda_.5} parent=1 // pred_check_branch
      %118 = sbr.rel (%p116) target = $region21
    $region20: #{_lambda_.5} parent=1 // pred_region
      %v119 = vld [vmem:[#allocation2] sm:$0xff]
      %v120 = vld [vmem:[#allocation2 + $0x8] sm:$0xff]
      %v121 = vld [vmem:[%s2] sm:$0x1]
      %v123 = vlaneseq
      %v124 = vshrl.u32 %v123, 7
      %v125 = vsub.s32 0, %v124
      %v126 = vrot.slane %v121, %v125
      %v128 = vadd.f32 %v119, %v126
      %v129 = vadd.f32 %v120, %v126
      %130 = vst.msk [vmem:[#allocation3] sm:$0xff] %vm30, %v128
      %131 = vst.msk [vmem:[#allocation3 + $0x8] sm:$0xff] %vm30, %v129
    $region21: #{_lambda_.5} parent=1 // pred_fallthru
      _
    // Predicated region
    $region22: #{_lambda_.5} parent=1 // pred_check
      _
    $region23: #{_lambda_.5} parent=1 // pred_check_branch
      %133 = sbr.rel (0) target = $region25
    $region24: #{_lambda_.5} parent=1 // pred_region
      %s135 = ssub.s32 256, 256
      %136 = vsyncadd [#allocation4], %s135
      %s137 = sshll.u32 [#allocation3], 4
      %s138 = int_to_ptr.vmem [resolvable:$true] %s137
      %143 = dma.vmem_to_hbm [thread:$0]  %s138, 256, %s3, [#allocation4], 128, 128, 8
    $region25: #{_lambda_.5} parent=1 // pred_fallthru
      _
    // Predicated region
    $region26: #{_lambda_.5} parent=1 // pred_check
      _
    $region27: #{_lambda_.5} parent=1 // pred_check_branch
      %145 = sbr.rel (0) target = $region29
    $region28: #{_lambda_.5} parent=1 // pred_region
      %146 = dma.done [#allocation4], 256
    $region29: #{_lambda_.5} parent=1 // pred_fallthru
      _
    %147 = vsyncpa [#allocation4], 1

// kernel: _lambda_.3
$region0: #{_lambda_.3}
  #allocation0 [shape = 'u32[]', space=smem, size = 0x4, offset = 0x4, fixed_abs, tag = 'smem constant byte address 0x4 - core index']
  #allocation1 [shape = 'u32[144,128]{1,0:T(1,128)}', space=vmem, size = 0x12000, scoped, tag = 'internal scratch']
  #allocation2 [shape = 'f32[16,96]{1,0:T(8,128)}', space=vmem, size = 0x2000, scoped, tag = 'scratch operand']
  %s0 = inlined_call_operand.hbm [shape: f32[16,32], index: 0, kind: input, shape index: {}]
  %s1 = inlined_call_operand.hbm [shape: f32[32,96], index: 1, kind: input, shape index: {}]
  %s2 = inlined_call_operand.vmem [shape: f32[1,96], index: 2, kind: input, shape index: {}]
  %s3 = inlined_call_operand.vmem [shape: f32[16,96], index: 3, kind: output, shape index: {}]
  %s4 = sld [smem:[#allocation0]]
  $region38: #{_lambda_.3} parent=0
    _
  %s6 = ssub.s32 1, %s4
  %s7 = scalar_select 0, %s6, %s4
  $region1: #{_lambda_.3} parent=0
    #allocation3 [shape = 'u8[8192]{0}', space=vmem, size = 0x2000, scoped, tag = 'input window, operand 0, single buffered']
    #allocation4 [shape = 's32[1]{0}', space=sflag, size = 0x4, scoped, tag = 'scoped memory for _lambda_.3']
    #allocation5 [shape = 'u8[16384]{0}', space=vmem, size = 0x4000, scoped, tag = 'input window, operand 1, single buffered']
    #allocation6 [shape = 's32[1]{0}', space=sflag, size = 0x4, scoped, tag = 'scoped memory for _lambda_.3']
    %8 = vsyncpa [#allocation4], 0
    %9 = vsyncpa [#allocation6], 0
    // Predicated region
    $region2: #{_lambda_.3} parent=1 // pred_check
      _
    $region3: #{_lambda_.3} parent=1 // pred_check_branch
      %11 = sbr.rel (0) target = $region5
    $region4: #{_lambda_.3} parent=1 // pred_region
      %s13 = ssub.s32 256, 256
      %14 = vsyncadd [#allocation4], %s13
      %s15 = sshll.u32 [#allocation3], 4
      %s16 = int_to_ptr.vmem [resolvable:$true] %s15
      %21 = dma.hbm_to_vmem [thread:$0]  %s0, 256, %s16, [#allocation4], 128, 128, 8
    $region5: #{_lambda_.3} parent=1 // pred_fallthru
      _
    // Predicated region
    $region6: #{_lambda_.3} parent=1 // pred_check
      _
    $region7: #{_lambda_.3} parent=1 // pred_check_branch
      %23 = sbr.rel (0) target = $region9
    $region8: #{_lambda_.3} parent=1 // pred_region
      %s25 = ssub.s32 512, 512
      %26 = vsyncadd [#allocation6], %s25
      %s27 = sshll.u32 [#allocation5], 4
      %s28 = int_to_ptr.vmem [resolvable:$true] %s27
      %33 = dma.hbm_to_vmem [thread:$0]  %s1, 512, %s28, [#allocation6], 128, 128, 8
    $region9: #{_lambda_.3} parent=1 // pred_fallthru
      _
    // Predicated region
    $region10: #{_lambda_.3} parent=1 // pred_check
      _
    $region11: #{_lambda_.3} parent=1 // pred_check_branch
      %35 = sbr.rel (0) target = $region13
    $region12: #{_lambda_.3} parent=1 // pred_region
      _
    $region13: #{_lambda_.3} parent=1 // pred_fallthru
      _
    // Predicated region
    $region14: #{_lambda_.3} parent=1 // pred_check
      _
    $region15: #{_lambda_.3} parent=1 // pred_check_branch
      %37 = sbr.rel (0) target = $region17
    $region16: #{_lambda_.3} parent=1 // pred_region
      %38 = dma.done [#allocation4], 256
    $region17: #{_lambda_.3} parent=1 // pred_fallthru
      _
    // Predicated region
    $region18: #{_lambda_.3} parent=1 // pred_check
      _
    $region19: #{_lambda_.3} parent=1 // pred_check_branch
      %40 = sbr.rel (0) target = $region21
    $region20: #{_lambda_.3} parent=1 // pred_region
      %41 = dma.done [#allocation6], 512
    $region21: #{_lambda_.3} parent=1 // pred_fallthru
      _
    %p42 = scmp.eq.s32.totalorder 0, 0
    // Predicated region
    $region22: #{_lambda_.3} parent=1 // pred_check
      %p43 = pneg %p42
    $region23: #{_lambda_.3} parent=1 // pred_check_branch
      %45 = sbr.rel (%p43) target = $region25
    $region24: #{_lambda_.3} parent=1 // pred_region
      %vm46 = vcmask 785408
      %47 = vst.msk [vmem:[#allocation2] sm:$0xff] %vm46, 0.0
      %48 = vst.msk [vmem:[#allocation2 + $0x8] sm:$0xff] %vm46, 0.0
    $region25: #{_lambda_.3} parent=1 // pred_fallthru
      _
    %v49 = vld [vmem:[#allocation2] sm:$0xff]
    %v50 = vld [vmem:[#allocation2 + $0x8] sm:$0xff]
    %v51 = vld [vmem:[#allocation3] sm:$0xff]
    %v52 = vld [vmem:[#allocation3 + $0x8] sm:$0xff]
    %v53 = vld [vmem:[#allocation5] sm:$0xff]
    %v54 = vld [vmem:[#allocation5 + $0x8] sm:$0xff]
    %v55 = vld [vmem:[#allocation5 + $0x10] sm:$0xff]
    %v56 = vld [vmem:[#allocation5 + $0x18] sm:$0xff]
    %vm57 = vcmask 261120
    %v59 = vsel %vm57, %v51, 0
    %v62 = vsel %vm57, %v52, 0
    %64 = vmatprep.subr.mxu0 0.0
    %65 = vmatpush1.msra.mxu0 %v53
    %66 = vmatprep.subr.mxu0 0.0
    %67 = vmatpush1.msra.mxu0 %v54
    %68 = vmatprep.subr.mxu0 0.0
    %69 = vmatpush1.msra.mxu0 %v55
    %70 = vmatprep.subr.mxu0 0.0
    %71 = vmatpush1.msra.mxu0 %v56
    %72 = vmatprep.subr.mxu0 0.0
    %73 = vmatpush1.msra.mxu0 0.0
    %74 = vmatprep.subr.mxu0 0.0
    %75 = vmatpush1.msra.mxu0 0.0
    %76 = vmatprep.subr.mxu0 0.0
    %77 = vmatpush1.msra.mxu0 0.0
    %78 = vmatprep.subr.mxu0 0.0
    %79 = vmatpush1.msra.mxu0 0.0
    %80 = vmatprep.subr.mxu0 0.0
    %81 = vmatpush1.msra.mxu0 0.0
    %82 = vmatprep.subr.mxu0 0.0
    %83 = vmatpush1.msra.mxu0 0.0
    %84 = vmatprep.subr.mxu0 0.0
    %85 = vmatpush1.msra.mxu0 0.0
    %86 = vmatprep.subr.mxu0 0.0
    %87 = vmatpush1.msra.mxu0 0.0
    %88 = vmatprep.subr.mxu0 0.0
    %89 = vmatpush1.msra.mxu0 0.0
    %90 = vmatprep.subr.mxu0 0.0
    %91 = vmatpush1.msra.mxu0 0.0
    %92 = vmatprep.subr.mxu0 0.0
    %93 = vmatpush1.msra.mxu0 0.0
    %94 = vmatprep.subr.mxu0 0.0
    %95 = vmatpush1.msra.mxu0 0.0
    %96 = vmatprep.subr.mxu0 0.0
    %97 = vmatpush1.msra.mxu0 0.0
    %98 = vmatprep.subr.mxu0 0.0
    %99 = vmatpush1.msra.mxu0 0.0
    %100 = vmatprep.subr.mxu0 0.0
    %101 = vmatpush1.msra.mxu0 0.0
    %102 = vmatprep.subr.mxu0 0.0
    %103 = vmatpush1.msra.mxu0 0.0
    %104 = vmatprep.subr.mxu0 0.0
    %105 = vmatpush1.msra.mxu0 0.0
    %106 = vmatprep.subr.mxu0 0.0
    %107 = vmatpush1.msra.mxu0 0.0
    %108 = vmatprep.subr.mxu0 0.0
    %109 = vmatpush1.msra.mxu0 0.0
    %110 = vmatprep.subr.mxu0 0.0
    %111 = vmatpush1.msra.mxu0 0.0
    %112 = vmatprep.subr.mxu0 0.0
    %113 = vmatpush1.msra.mxu0 0.0
    %114 = vmatprep.subr.mxu0 0.0
    %115 = vmatpush1.msra.mxu0 0.0
    %116 = vmatprep.subr.mxu0 0.0
    %117 = vmatpush1.msra.mxu0 0.0
    %118 = vmatprep.subr.mxu0 0.0
    %119 = vmatpush1.msra.mxu0 0.0
    %120 = vmatprep.subr.mxu0 0.0
    %121 = vmatpush1.msra.mxu0 0.0
    %122 = vmatprep.subr.mxu0 0.0
    %123 = vmatpush1.msra.mxu0 0.0
    %124 = vmatprep.subr.mxu0 0.0
    %125 = vmatpush1.msra.mxu0 0.0
    %126 = vmatprep.subr.mxu0 0.0
    %127 = vmatpush1.msra.mxu0 0.0
    %128 = vmatprep.mubr.f32.mxu0 0.0
    %129 = vmatmul.mubr.f32.gmra.mrb[0].mxu0 %v59
    %v130 = vpop.f32.mrb[0].mxu0
    %v131 = vadd.f32 0.0, %v130
    %v132 = vpop.f32.mrb[0].mxu0
    %133 = vmatprep.mubr.f32.mxu0 0.0
    %134 = vmatmul.mubr.f32.gmra.mrb[0].mxu0 %v62
    %v135 = vpop.f32.mrb[0].mxu0
    %v136 = vadd.f32 0.0, %v135
    %v137 = vpop.f32.mrb[0].mxu0
    %138 = vdwg.mxu0
    %v139 = vadd.f32 %v49, %v131
    %v140 = vadd.f32 %v50, %v136
    %vm141 = vcmask 785408
    %142 = vst.msk [vmem:[#allocation2] sm:$0xff] %vm141, %v139
    %143 = vst.msk [vmem:[#allocation2 + $0x8] sm:$0xff] %vm141, %v140
    // Predicated region
    $region26: #{_lambda_.3} parent=1 // pred_check
      %p144 = pneg %p42
    $region27: #{_lambda_.3} parent=1 // pred_check_branch
      %146 = sbr.rel (%p144) target = $region29
    $region28: #{_lambda_.3} parent=1 // pred_region
      %v147 = vld [vmem:[#allocation2] sm:$0xff]
      %v148 = vld [vmem:[#allocation2 + $0x8] sm:$0xff]
      %v149 = vld [vmem:[%s2] sm:$0x1]
      %v151 = vlaneseq
      %v152 = vshrl.u32 %v151, 7
      %v153 = vsub.s32 0, %v152
      %v154 = vrot.slane %v149, %v153
      %v156 = vadd.f32 %v147, %v154
      %v157 = vadd.f32 %v148, %v154
      %158 = vst.msk [vmem:[%s3] sm:$0xff] %vm141, %v156
      %159 = vst.msk [vmem:[%s3 + $0x8] sm:$0xff] %vm141, %v157
    $region29: #{_lambda_.3} parent=1 // pred_fallthru
      _
    // Predicated region
    $region30: #{_lambda_.3} parent=1 // pred_check
      _
    $region31: #{_lambda_.3} parent=1 // pred_check_branch
      %161 = sbr.rel (0) target = $region33
    $region32: #{_lambda_.3} parent=1 // pred_region
      _
    $region33: #{_lambda_.3} parent=1 // pred_fallthru
      _
    // Predicated region
    $region34: #{_lambda_.3} parent=1 // pred_check
      _
    $region35: #{_lambda_.3} parent=1 // pred_check_branch
      %163 = sbr.rel (0) target = $region37
    $region36: #{_lambda_.3} parent=1 // pred_region
      _
    $region37: #{_lambda_.3} parent=1 // pred_fallthru
      _
    %164 = vsyncpa [#allocation4], 1
    %165 = vsyncpa [#allocation6], 1

// kernel: _lambda_.4
$region0: #{_lambda_.4}
  #allocation0 [shape = 'u32[]', space=smem, size = 0x4, offset = 0x4, fixed_abs, tag = 'smem constant byte address 0x4 - core index']
  #allocation1 [shape = 'u32[144,128]{1,0:T(1,128)}', space=vmem, size = 0x12000, scoped, tag = 'internal scratch']
  %s0 = inlined_call_operand.vmem [shape: f32[2,8,96], index: 0, kind: input, shape index: {}, may-alias: {0,1}]
  %s1 = inlined_call_operand.vmem [shape: f32[2,8,96], index: 1, kind: input, shape index: {}, may-alias: {0,1}]
  %s2 = inlined_call_operand.vmem [shape: f32[1,8], index: 2, kind: input, shape index: {}]
  %s3 = inlined_call_operand.vmem [shape: f32[1,8], index: 3, kind: input, shape index: {}, may-alias: {3,5}]
  %s4 = inlined_call_operand.vmem [shape: f32[1,8], index: 4, kind: input, shape index: {}]
  %s5 = inlined_call_operand.vmem [shape: f32[1,8], index: 5, kind: input, shape index: {}, may-alias: {3,5}]
  %s6 = inlined_call_operand.vmem [shape: f32[2,8,32], index: 6, kind: output, shape index: {}]
  %s7 = sld [smem:[#allocation0]]
  $region57: #{_lambda_.4} parent=0
    _
  %s9 = ssub.s32 1, %s7
  %s10 = scalar_select 0, %s9, %s7
  loop: start=0, step=1, limit=4
  $region2: #{_lambda_.4} parent=0 // loop_pre_header
    _
  $region3: #{_lambda_.4} parent=0 // loop_header
    %s12 = sphi 0, %s16
    %p13 = scmp.ge.s32.totalorder %s12, 4
    %s19 = sphi 0, %s31
    %s20 = sphi 0, %s27
    %s21 = sphi 0, %s19
    %s22 = sphi 0, %s20
    %s23 = sphi 0, %s21
    %s24 = sphi 0, %s22
    %s36 = sphi 0, %s38
    %s39 = sphi 0, %s36
    %s40 = sphi 0, %s39
    %s56 = sphi 0, %s40
    %s62 = sphi 0, %s64
    %s65 = sphi 0, %s62
    %s66 = sphi 0, %s65
    %s82 = sphi 0, %s66
    %s86 = sphi 0, %s86
    %s88 = sphi 0, %s86
    %s89 = sphi 0, %s88
    %s103 = sphi 0, %s89
    %s107 = sphi 0, %s107
    %s109 = sphi 0, %s107
    %s110 = sphi 0, %s109
    %s124 = sphi 0, %s110
    %s128 = sphi 0, %s128
    %s130 = sphi 0, %s128
    %s131 = sphi 0, %s130
    %s145 = sphi 0, %s131
    %s149 = sphi 0, %s149
    %s151 = sphi 0, %s149
    %s152 = sphi 0, %s151
    %s166 = sphi 0, %s152
    %s174 = sphi 0, %s176
    %s177 = sphi 0, %s174
    %s178 = sphi 0, %s177
    %s194 = sphi 0, %s178
  $region4: #{_lambda_.4} parent=0 // loop_header_branch
    %15 = sbr.rel (%p13) target = $region8
  $region5: #{_lambda_.4} parent=0 // loop_body
    %s17 = ssub.s32 %s12, 1
    %s18 = ssub.s32 %s12, 2
    %s25 = sadd.s32 1, %s20
    %p26 = scmp.ge.s32.totalorder %s25, 1
    %s27 = scalar_select %p26, 0, %s25
    %s28 = sadd.s32 1, %s19
    %s29 = scalar_select %p26, %s28, %s19
    %p30 = scmp.ge.s32.totalorder %s29, 2
    %s31 = scalar_select %p30, 0, %s29
    %s32 = ssub.s32 %s19, %s31
    %s33 = ssub.s32 %s20, %s27
    %s34 = sor.u32 %s32, %s33
    %p35 = scmp.eq.s32.totalorder %s34, 0
    %s37 = sadd.s32 %s36, 1
    %s38 = scalar_select %p35, %s36, %s37
    %p41 = pneg %p35
    %p42 = scmp.eq.s32.totalorder %s12, 1
    %p43 = por %p41, %p42
    %p44 = scmp.ne.s32.totalorder %s36, %s39
    %p45 = scmp.eq.s32.totalorder %s12, 0
    %p46 = por %p44, %p45
    %p47 = scmp.ne.s32.totalorder %s36, %s39
    %p48 = scmp.eq.s32.totalorder %s17, 1
    %p49 = por %p47, %p48
    %p50 = scmp.ne.s32.totalorder %s39, %s40
    %p51 = scmp.eq.s32.totalorder %s17, 0
    %p52 = por %p50, %p51
    %p53 = scmp.ne.s32.totalorder %s39, %s40
    %p54 = scmp.eq.s32.totalorder %s18, 1
    %p55 = por %p53, %p54
    %p57 = scmp.ne.s32.totalorder %s40, %s56
    %p58 = scmp.eq.s32.totalorder %s18, 0
    %p59 = por %p57, %p58
    %s60 = ssub.s32 %s19, %s31
    %p61 = scmp.eq.s32.totalorder %s60, 0
    %s63 = sadd.s32 %s62, 1
    %s64 = scalar_select %p61, %s62, %s63
    %p67 = pneg %p61
    %p68 = scmp.eq.s32.totalorder %s12, 1
    %p69 = por %p67, %p68
    %p70 = scmp.ne.s32.totalorder %s62, %s65
    %p71 = scmp.eq.s32.totalorder %s12, 0
    %p72 = por %p70, %p71
    %p73 = scmp.ne.s32.totalorder %s62, %s65
    %p74 = scmp.eq.s32.totalorder %s17, 1
    %p75 = por %p73, %p74
    %p76 = scmp.ne.s32.totalorder %s65, %s66
    %p77 = scmp.eq.s32.totalorder %s17, 0
    %p78 = por %p76, %p77
    %p79 = scmp.ne.s32.totalorder %s65, %s66
    %p80 = scmp.eq.s32.totalorder %s18, 1
    %p81 = por %p79, %p80
    %p83 = scmp.ne.s32.totalorder %s66, %s82
    %p84 = scmp.eq.s32.totalorder %s18, 0
    %p85 = por %p83, %p84
    %s87 = sadd.s32 %s86, 1
    %p90 = scmp.eq.s32.totalorder %s12, 1
    %p91 = scmp.ne.s32.totalorder %s86, %s88
    %p92 = scmp.eq.s32.totalorder %s12, 0
    %p93 = por %p91, %p92
    %p94 = scmp.ne.s32.totalorder %s86, %s88
    %p95 = scmp.eq.s32.totalorder %s17, 1
    %p96 = por %p94, %p95
    %p97 = scmp.ne.s32.totalorder %s88, %s89
    %p98 = scmp.eq.s32.totalorder %s17, 0
    %p99 = por %p97, %p98
    %p100 = scmp.ne.s32.totalorder %s88, %s89
    %p101 = scmp.eq.s32.totalorder %s18, 1
    %p102 = por %p100, %p101
    %p104 = scmp.ne.s32.totalorder %s89, %s103
    %p105 = scmp.eq.s32.totalorder %s18, 0
    %p106 = por %p104, %p105
    %s108 = sadd.s32 %s107, 1
    %p111 = scmp.eq.s32.totalorder %s12, 1
    %p112 = scmp.ne.s32.totalorder %s107, %s109
    %p113 = scmp.eq.s32.totalorder %s12, 0
    %p114 = por %p112, %p113
    %p115 = scmp.ne.s32.totalorder %s107, %s109
    %p116 = scmp.eq.s32.totalorder %s17, 1
    %p117 = por %p115, %p116
    %p118 = scmp.ne.s32.totalorder %s109, %s110
    %p119 = scmp.eq.s32.totalorder %s17, 0
    %p120 = por %p118, %p119
    %p121 = scmp.ne.s32.totalorder %s109, %s110
    %p122 = scmp.eq.s32.totalorder %s18, 1
    %p123 = por %p121, %p122
    %p125 = scmp.ne.s32.totalorder %s110, %s124
    %p126 = scmp.eq.s32.totalorder %s18, 0
    %p127 = por %p125, %p126
    %s129 = sadd.s32 %s128, 1
    %p132 = scmp.eq.s32.totalorder %s12, 1
    %p133 = scmp.ne.s32.totalorder %s128, %s130
    %p134 = scmp.eq.s32.totalorder %s12, 0
    %p135 = por %p133, %p134
    %p136 = scmp.ne.s32.totalorder %s128, %s130
    %p137 = scmp.eq.s32.totalorder %s17, 1
    %p138 = por %p136, %p137
    %p139 = scmp.ne.s32.totalorder %s130, %s131
    %p140 = scmp.eq.s32.totalorder %s17, 0
    %p141 = por %p139, %p140
    %p142 = scmp.ne.s32.totalorder %s130, %s131
    %p143 = scmp.eq.s32.totalorder %s18, 1
    %p144 = por %p142, %p143
    %p146 = scmp.ne.s32.totalorder %s131, %s145
    %p147 = scmp.eq.s32.totalorder %s18, 0
    %p148 = por %p146, %p147
    %s150 = sadd.s32 %s149, 1
    %p153 = scmp.eq.s32.totalorder %s12, 1
    %p154 = scmp.ne.s32.totalorder %s149, %s151
    %p155 = scmp.eq.s32.totalorder %s12, 0
    %p156 = por %p154, %p155
    %p157 = scmp.ne.s32.totalorder %s149, %s151
    %p158 = scmp.eq.s32.totalorder %s17, 1
    %p159 = por %p157, %p158
    %p160 = scmp.ne.s32.totalorder %s151, %s152
    %p161 = scmp.eq.s32.totalorder %s17, 0
    %p162 = por %p160, %p161
    %p163 = scmp.ne.s32.totalorder %s151, %s152
    %p164 = scmp.eq.s32.totalorder %s18, 1
    %p165 = por %p163, %p164
    %p167 = scmp.ne.s32.totalorder %s152, %s166
    %p168 = scmp.eq.s32.totalorder %s18, 0
    %p169 = por %p167, %p168
    %s170 = ssub.s32 %s19, %s31
    %s171 = ssub.s32 %s20, %s27
    %s172 = sor.u32 %s170, %s171
    %p173 = scmp.eq.s32.totalorder %s172, 0
    %s175 = sadd.s32 %s174, 1
    %s176 = scalar_select %p173, %s174, %s175
    %p179 = pneg %p173
    %p180 = scmp.eq.s32.totalorder %s12, 1
    %p181 = por %p179, %p180
    %p182 = scmp.ne.s32.totalorder %s174, %s177
    %p183 = scmp.eq.s32.totalorder %s12, 0
    %p184 = por %p182, %p183
    %p185 = scmp.ne.s32.totalorder %s174, %s177
    %p186 = scmp.eq.s32.totalorder %s17, 1
    %p187 = por %p185, %p186
    %p188 = scmp.ne.s32.totalorder %s177, %s178
    %p189 = scmp.eq.s32.totalorder %s17, 0
    %p190 = por %p188, %p189
    %p191 = scmp.ne.s32.totalorder %s177, %s178
    %p192 = scmp.eq.s32.totalorder %s18, 1
    %p193 = por %p191, %p192
    %p195 = scmp.ne.s32.totalorder %s178, %s194
    %p196 = scmp.eq.s32.totalorder %s18, 0
    %p197 = por %p195, %p196
    %p198 = scmp.le.s32.totalorder 1, %s12
    %p199 = scmp.lt.s32.totalorder %s12, 3
    %p200 = pnand %p198, %p199
    %p201 = pneg %p200
    // Predicated region
    $region9: #{_lambda_.4} parent=5 // pred_check
      _
    $region10: #{_lambda_.4} parent=5 // pred_check_branch
      %203 = sbr.rel (%p200) target = $region12
    $region11: #{_lambda_.4} parent=5 // pred_region
      %s204 = ssub.s32 %s12, 1
      // Predicated region
      $region13: #{_lambda_.4} parent=11 // pred_check
        %p205 = pneg %p99
      $region14: #{_lambda_.4} parent=11 // pred_check_branch
        %207 = sbr.rel (%p205) target = $region16
      $region15: #{_lambda_.4} parent=11 // pred_region
        _
      $region16: #{_lambda_.4} parent=11 // pred_fallthru
        _
      // Predicated region
      $region17: #{_lambda_.4} parent=11 // pred_check
        %p208 = pneg %p120
      $region18: #{_lambda_.4} parent=11 // pred_check_branch
        %210 = sbr.rel (%p208) target = $region20
      $region19: #{_lambda_.4} parent=11 // pred_region
        _
      $region20: #{_lambda_.4} parent=11 // pred_fallthru
        _
      // Predicated region
      $region21: #{_lambda_.4} parent=11 // pred_check
        %p211 = pneg %p141
      $region22: #{_lambda_.4} parent=11 // pred_check_branch
        %213 = sbr.rel (%p211) target = $region24
      $region23: #{_lambda_.4} parent=11 // pred_region
        _
      $region24: #{_lambda_.4} parent=11 // pred_fallthru
        _
      // Predicated region
      $region25: #{_lambda_.4} parent=11 // pred_check
        %p214 = pneg %p162
      $region26: #{_lambda_.4} parent=11 // pred_check_branch
        %216 = sbr.rel (%p214) target = $region28
      $region27: #{_lambda_.4} parent=11 // pred_region
        _
      $region28: #{_lambda_.4} parent=11 // pred_fallthru
        _
    $region12: #{_lambda_.4} parent=5 // pred_fallthru
      _
    %p217 = scmp.lt.s32.totalorder %s12, 2
    // Predicated region
    $region29: #{_lambda_.4} parent=5 // pred_check
      %p218 = pneg %p217
    $region30: #{_lambda_.4} parent=5 // pred_check_branch
      %220 = sbr.rel (%p218) target = $region32
    $region31: #{_lambda_.4} parent=5 // pred_region
      // Predicated region
      $region33: #{_lambda_.4} parent=31 // pred_check
        %p221 = pneg %p46
      $region34: #{_lambda_.4} parent=31 // pred_check_branch
        %223 = sbr.rel (%p221) target = $region36
      $region35: #{_lambda_.4} parent=31 // pred_region
        %p224 = scmp.lt.s32.totalorder %s19, 1
        %s225 = scalar_select %p224, %s19, 1
        %p226 = scmp.lt.s32.totalorder %s20, 0
        %s227 = scalar_select %p226, %s20, 0
        %s228 = sadd.s32 %s227, %s225
        %s229 = smul.addr %s228, 8
        %s230 = scalar_lea.vmem %s0, %s229
      $region36: #{_lambda_.4} parent=31 // pred_fallthru
        _
      // Predicated region
      $region37: #{_lambda_.4} parent=31 // pred_check
        %p231 = pneg %p72
      $region38: #{_lambda_.4} parent=31 // pred_check_branch
        %233 = sbr.rel (%p231) target = $region40
      $region39: #{_lambda_.4} parent=31 // pred_region
        %p234 = scmp.lt.s32.totalorder %s19, 1
        %s235 = scalar_select %p234, %s19, 1
        %s236 = smul.addr %s235, 8
        %s237 = scalar_lea.vmem %s1, %s236
      $region40: #{_lambda_.4} parent=31 // pred_fallthru
        _
    $region32: #{_lambda_.4} parent=5 // pred_fallthru
      _
    %p238 = scmp.le.s32.totalorder 1, %s12
    %p239 = scmp.lt.s32.totalorder %s12, 3
    %p240 = pnand %p238, %p239
    %p241 = pneg %p240
    // Predicated region
    $region41: #{_lambda_.4} parent=5 // pred_check
      _
    $region42: #{_lambda_.4} parent=5 // pred_check_branch
      %243 = sbr.rel (%p240) target = $region44
    $region43: #{_lambda_.4} parent=5 // pred_region
      %s244 = ssub.s32 %s12, 1
      %p245 = scmp.lt.s32.totalorder %s21, 1
      %s246 = scalar_select %p245, %s21, 1
      %p247 = scmp.lt.s32.totalorder %s22, 0
      %s248 = scalar_select %p247, %s22, 0
      %s249 = sadd.s32 %s248, %s246
      %s250 = smul.addr %s249, 8
      %s251 = scalar_lea.vmem %s0, %s250
      %p252 = pneg %p52
      %p253 = pneg %p49
      %p254 = scmp.lt.s32.totalorder %s21, 1
      %s255 = scalar_select %p254, %s21, 1
      %s256 = smul.addr %s255, 8
      %s257 = scalar_lea.vmem %s1, %s256
      %p258 = pneg %p78
      %p259 = pneg %p75
      %p260 = pneg %p99
      %p261 = pneg %p96
      %p262 = pneg %p120
      %p263 = pneg %p117
      %p264 = pneg %p141
      %p265 = pneg %p138
      %p266 = pneg %p162
      %p267 = pneg %p159
      %p268 = pneg %p190
      %p269 = pneg %p187
      %p270 = scmp.lt.s32.totalorder %s21, 1
      %s271 = scalar_select %p270, %s21, 1
      %p272 = scmp.lt.s32.totalorder %s22, 0
      %s273 = scalar_select %p272, %s22, 0
      %s274 = sadd.s32 %s273, %s271
      %s275 = smul.addr %s274, 8
      %s276 = scalar_lea.vmem %s6, %s275
      %p277 = scmp.lt.s32.totalorder %s21, 1
      %s278 = scalar_select %p277, %s21, 1
      %p279 = scmp.lt.s32.totalorder %s22, 0
      %s280 = scalar_select %p279, %s22, 0
      %s281 = sadd.s32 %s280, %s278
      %s282 = smul.addr %s281, 8
      %s283 = scalar_lea.vmem %s0, %s282
      %p284 = scmp.lt.s32.totalorder %s21, 1
      %s285 = scalar_select %p284, %s21, 1
      %s286 = smul.addr %s285, 8
      %s287 = scalar_lea.vmem %s1, %s286
      %p288 = scmp.lt.s32.totalorder %s21, 1
      %s289 = scalar_select %p288, %s21, 1
      %p290 = scmp.lt.s32.totalorder %s22, 0
      %s291 = scalar_select %p290, %s22, 0
      %s292 = sadd.s32 %s291, %s289
      %s293 = smul.addr %s292, 8
      %s294 = scalar_lea.vmem %s6, %s293
      %v295 = vld [vmem:[%s283] sm:$0xff]
      %v296 = vld [vmem:[%s287] sm:$0xff]
      %v297 = vld [vmem:[%s2] sm:$0x1]
      %v298 = vld [vmem:[%s3] sm:$0x1]
      %v299 = vld [vmem:[%s4] sm:$0x1]
      %v300 = vld [vmem:[%s5] sm:$0x1]
      %vm301 = vcmask 64512
      %v302 = vsel %vm301, %v295, 0.0
      %303 = vadd.xlane.f32.xlu0 %v302
      %v304 = vpop.xlane.xlu0 %303
      %v305 = vrcp.pop 8.0
      %v306 = vmul.f32 %v304, %v305
      %v307 = vsub.f32 %v295, %v306
      %v308 = vmul.f32 %v307, %v307
      %v309 = vsel %vm301, %v308, 0.0
      %310 = vadd.xlane.f32.xlu0 %v309
      %v311 = vpop.xlane.xlu0 %310
      %v312 = vmul.f32 %v311, %v305
      %v313 = vadd.f32 %v312, 1e-05
      %v314 = vrsqrt.pop %v313
      %v315 = vmul.f32 %v307, %v314
      %v317 = vlaneseq
      %v318 = vshrl.u32 %v317, 7
      %v319 = vsub.s32 0, %v318
      %v320 = vrot.slane %v297, %v319
      %v322 = vmul.f32 %v315, %v320
      %v324 = vlaneseq
      %v325 = vshrl.u32 %v324, 7
      %v326 = vsub.s32 0, %v325
      %v327 = vrot.slane %v298, %v326
      %v329 = vadd.f32 %v322, %v327
      %331 = vrot.lane.b32.xlu0 %v296, 96
      %v332 = vpop.permute.xlu0 %331
      %v334 = vsel %vm301, %v332, 0.0
      %335 = vadd.xlane.f32.xlu0 %v334
      %v336 = vpop.xlane.xlu0 %335
      %v337 = vmul.f32 %v336, %v305
      %v338 = vsub.f32 %v296, %v337
      %v339 = vmul.f32 %v338, %v338
      %341 = vrot.lane.b32.xlu0 %v339, 96
      %v342 = vpop.permute.xlu0 %341
      %v344 = vsel %vm301, %v342, 0.0
      %345 = vadd.xlane.f32.xlu0 %v344
      %v346 = vpop.xlane.xlu0 %345
      %v347 = vmul.f32 %v346, %v305
      %v348 = vadd.f32 %v347, 1e-05
      %v349 = vrsqrt.pop %v348
      %v350 = vmul.f32 %v338, %v349
      %v352 = vlaneseq
      %v353 = vshrl.u32 %v352, 7
      %v354 = vsub.s32 0, %v353
      %v355 = vrot.slane %v299, %v354
      %356 = vrot.lane.b32.xlu0 %v355, 32
      %v357 = vpop.permute.xlu0 %356
      %v359 = vmul.f32 %v350, %v357
      %v361 = vlaneseq
      %v362 = vshrl.u32 %v361, 7
      %v363 = vsub.s32 0, %v362
      %v364 = vrot.slane %v300, %v363
      %365 = vrot.lane.b32.xlu0 %v364, 32
      %v366 = vpop.permute.xlu0 %365
      %v368 = vadd.f32 %v359, %v366
      %370 = vrot.lane.b32.xlu0 %v368, 96
      %v371 = vpop.permute.xlu0 %370
      %v373 = vsel %vm301, %v329, 0
      %v375 = vsel %vm301, %v371, 0
      %377 = vmatprep.subr.mxu0 0.0
      %378 = vmatpush1.xpose.msra.mxu0 %v375
      %379 = vmatprep.subr.mxu0 0.0
      %380 = vmatpush1.xpose.msra.mxu0 0.0
      %381 = vmatprep.subr.mxu0 0.0
      %382 = vmatpush1.xpose.msra.mxu0 0.0
      %383 = vmatprep.subr.mxu0 0.0
      %384 = vmatpush1.xpose.msra.mxu0 0.0
      %385 = vmatprep.subr.mxu0 0.0
      %386 = vmatpush1.xpose.msra.mxu0 0.0
      %387 = vmatprep.subr.mxu0 0.0
      %388 = vmatpush1.xpose.msra.mxu0 0.0
      %389 = vmatprep.subr.mxu0 0.0
      %390 = vmatpush1.xpose.msra.mxu0 0.0
      %391 = vmatprep.subr.mxu0 0.0
      %392 = vmatpush1.xpose.msra.mxu0 0.0
      %393 = vmatprep.subr.mxu0 0.0
      %394 = vmatpush1.xpose.msra.mxu0 0.0
      %395 = vmatprep.subr.mxu0 0.0
      %396 = vmatpush1.xpose.msra.mxu0 0.0
      %397 = vmatprep.subr.mxu0 0.0
      %398 = vmatpush1.xpose.msra.mxu0 0.0
      %399 = vmatprep.subr.mxu0 0.0
      %400 = vmatpush1.xpose.msra.mxu0 0.0
      %401 = vmatprep.subr.mxu0 0.0
      %402 = vmatpush1.xpose.msra.mxu0 0.0
      %403 = vmatprep.subr.mxu0 0.0
      %404 = vmatpush1.xpose.msra.mxu0 0.0
      %405 = vmatprep.subr.mxu0 0.0
      %406 = vmatpush1.xpose.msra.mxu0 0.0
      %407 = vmatprep.subr.mxu0 0.0
      %408 = vmatpush1.xpose.msra.mxu0 0.0
      %409 = vmatprep.subr.mxu0 0.0
      %410 = vmatpush1.xpose.msra.mxu0 0.0
      %411 = vmatprep.subr.mxu0 0.0
      %412 = vmatpush1.xpose.msra.mxu0 0.0
      %413 = vmatprep.subr.mxu0 0.0
      %414 = vmatpush1.xpose.msra.mxu0 0.0
      %415 = vmatprep.subr.mxu0 0.0
      %416 = vmatpush1.xpose.msra.mxu0 0.0
      %417 = vmatprep.subr.mxu0 0.0
      %418 = vmatpush1.xpose.msra.mxu0 0.0
      %419 = vmatprep.subr.mxu0 0.0
      %420 = vmatpush1.xpose.msra.mxu0 0.0
      %421 = vmatprep.subr.mxu0 0.0
      %422 = vmatpush1.xpose.msra.mxu0 0.0
      %423 = vmatprep.subr.mxu0 0.0
      %424 = vmatpush1.xpose.msra.mxu0 0.0
      %425 = vmatprep.subr.mxu0 0.0
      %426 = vmatpush1.xpose.msra.mxu0 0.0
      %427 = vmatprep.subr.mxu0 0.0
      %428 = vmatpush1.xpose.msra.mxu0 0.0
      %429 = vmatprep.subr.mxu0 0.0
      %430 = vmatpush1.xpose.msra.mxu0 0.0
      %431 = vmatprep.subr.mxu0 0.0
      %432 = vmatpush1.xpose.msra.mxu0 0.0
      %433 = vmatprep.subr.mxu0 0.0
      %434 = vmatpush1.xpose.msra.mxu0 0.0
      %435 = vmatprep.subr.mxu0 0.0
      %436 = vmatpush1.xpose.msra.mxu0 0.0
      %437 = vmatprep.subr.mxu0 0.0
      %438 = vmatpush1.xpose.msra.mxu0 0.0
      %439 = vmatprep.subr.mxu0 0.0
      %440 = vmatpush1.xpose.msra.mxu0 0.0
      %441 = vmatprep.mubr.f32.mxu0 0.0
      %442 = vmatmul.mubr.f32.gmra.mrb[0].mxu0 %v373
      %v443 = vpop.f32.mrb[0].mxu0
      %v444 = vadd.f32 0.0, %v443
      %v445 = vpop.f32.mrb[0].mxu0
      %446 = vdwg.mxu0
      %v447 = vsel %vm301, %v444, -inf
      %448 = vmax.xlane.f32.xlu0 %v447
      %v449 = vpop.xlane.xlu0 %448
      %v450 = vsub.f32 %v444, %v449
      %v451 = vmul.f32 %v450, 1.442695
      %v452 = vpow.pop %v451
      %v453 = vsel %vm301, %v452, 0.0
      %454 = vadd.xlane.f32.xlu0 %v453
      %v455 = vpop.xlane.xlu0 %454
      %v456 = vrcp.pop %v455
      %v457 = vmul.f32 %v452, %v456
      %458 = vrot.lane.b32.xlu0 %v296, 64
      %v459 = vpop.permute.xlu0 %458
      %v462 = vsel %vm301, %v457, 0
      %464 = vmatprep.subr.mxu0 0.0
      %465 = vmatpush1.msra.mxu0 %v459
      %466 = vmatprep.subr.mxu0 0.0
      %467 = vmatpush1.msra.mxu0 0.0
      %468 = vmatprep.subr.mxu0 0.0
      %469 = vmatpush1.msra.mxu0 0.0
      %470 = vmatprep.subr.mxu0 0.0
      %471 = vmatpush1.msra.mxu0 0.0
      %472 = vmatprep.subr.mxu0 0.0
      %473 = vmatpush1.msra.mxu0 0.0
      %474 = vmatprep.subr.mxu0 0.0
      %475 = vmatpush1.msra.mxu0 0.0
      %476 = vmatprep.subr.mxu0 0.0
      %477 = vmatpush1.msra.mxu0 0.0
      %478 = vmatprep.subr.mxu0 0.0
      %479 = vmatpush1.msra.mxu0 0.0
      %480 = vmatprep.subr.mxu0 0.0
      %481 = vmatpush1.msra.mxu0 0.0
      %482 = vmatprep.subr.mxu0 0.0
      %483 = vmatpush1.msra.mxu0 0.0
      %484 = vmatprep.subr.mxu0 0.0
      %485 = vmatpush1.msra.mxu0 0.0
      %486 = vmatprep.subr.mxu0 0.0
      %487 = vmatpush1.msra.mxu0 0.0
      %488 = vmatprep.subr.mxu0 0.0
      %489 = vmatpush1.msra.mxu0 0.0
      %490 = vmatprep.subr.mxu0 0.0
      %491 = vmatpush1.msra.mxu0 0.0
      %492 = vmatprep.subr.mxu0 0.0
      %493 = vmatpush1.msra.mxu0 0.0
      %494 = vmatprep.subr.mxu0 0.0
      %495 = vmatpush1.msra.mxu0 0.0
      %496 = vmatprep.subr.mxu0 0.0
      %497 = vmatpush1.msra.mxu0 0.0
      %498 = vmatprep.subr.mxu0 0.0
      %499 = vmatpush1.msra.mxu0 0.0
      %500 = vmatprep.subr.mxu0 0.0
      %501 = vmatpush1.msra.mxu0 0.0
      %502 = vmatprep.subr.mxu0 0.0
      %503 = vmatpush1.msra.mxu0 0.0
      %504 = vmatprep.subr.mxu0 0.0
      %505 = vmatpush1.msra.mxu0 0.0
      %506 = vmatprep.subr.mxu0 0.0
      %507 = vmatpush1.msra.mxu0 0.0
      %508 = vmatprep.subr.mxu0 0.0
      %509 = vmatpush1.msra.mxu0 0.0
      %510 = vmatprep.subr.mxu0 0.0
      %511 = vmatpush1.msra.mxu0 0.0
      %512 = vmatprep.subr.mxu0 0.0
      %513 = vmatpush1.msra.mxu0 0.0
      %514 = vmatprep.subr.mxu0 0.0
      %515 = vmatpush1.msra.mxu0 0.0
      %516 = vmatprep.subr.mxu0 0.0
      %517 = vmatpush1.msra.mxu0 0.0
      %518 = vmatprep.subr.mxu0 0.0
      %519 = vmatpush1.msra.mxu0 0.0
      %520 = vmatprep.subr.mxu0 0.0
      %521 = vmatpush1.msra.mxu0 0.0
      %522 = vmatprep.subr.mxu0 0.0
      %523 = vmatpush1.msra.mxu0 0.0
      %524 = vmatprep.subr.mxu0 0.0
      %525 = vmatpush1.msra.mxu0 0.0
      %526 = vmatprep.subr.mxu0 0.0
      %527 = vmatpush1.msra.mxu0 0.0
      %528 = vmatprep.mubr.f32.mxu0 0.0
      %529 = vmatmul.mubr.f32.gmra.mrb[0].mxu0 %v462
      %v530 = vpop.f32.mrb[0].mxu0
      %v531 = vadd.f32 0.0, %v530
      %v532 = vpop.f32.mrb[0].mxu0
      %533 = vdwg.mxu0
      %535 = vrot.lane.b32.xlu0 %v295, 120
      %v536 = vpop.permute.xlu0 %535
      %v538 = vsel %vm301, %v536, 0.0
      %539 = vadd.xlane.f32.xlu0 %v538
      %v540 = vpop.xlane.xlu0 %539
      %v541 = vmul.f32 %v540, %v305
      %v542 = vsub.f32 %v295, %v541
      %v543 = vmul.f32 %v542, %v542
      %545 = vrot.lane.b32.xlu0 %v543, 120
      %v546 = vpop.permute.xlu0 %545
      %v548 = vsel %vm301, %v546, 0.0
      %549 = vadd.xlane.f32.xlu0 %v548
      %v550 = vpop.xlane.xlu0 %549
      %v551 = vmul.f32 %v550, %v305
      %v552 = vadd.f32 %v551, 1e-05
      %v553 = vrsqrt.pop %v552
      %v554 = vmul.f32 %v542, %v553
      %555 = vrot.lane.b32.xlu0 %v320, 8
      %v556 = vpop.permute.xlu0 %555
      %v558 = vmul.f32 %v554, %v556
      %559 = vrot.lane.b32.xlu0 %v327, 8
      %v560 = vpop.permute.xlu0 %559
      %v562 = vadd.f32 %v558, %v560
      %563 = vrot.lane.b32.xlu0 %v296, 88
      %v564 = vpop.permute.xlu0 %563
      %v566 = vsel %vm301, %v564, 0.0
      %567 = vadd.xlane.f32.xlu0 %v566
      %v568 = vpop.xlane.xlu0 %567
      %v569 = vmul.f32 %v568, %v305
      %v570 = vsub.f32 %v296, %v569
      %v571 = vmul.f32 %v570, %v570
      %573 = vrot.lane.b32.xlu0 %v571, 88
      %v574 = vpop.permute.xlu0 %573
      %v576 = vsel %vm301, %v574, 0.0
      %577 = vadd.xlane.f32.xlu0 %v576
      %v578 = vpop.xlane.xlu0 %577
      %v579 = vmul.f32 %v578, %v305
      %v580 = vadd.f32 %v579, 1e-05
      %v581 = vrsqrt.pop %v580
      %v582 = vmul.f32 %v570, %v581
      %583 = vrot.lane.b32.xlu0 %v355, 40
      %v584 = vpop.permute.xlu0 %583
      %v586 = vmul.f32 %v582, %v584
      %587 = vrot.lane.b32.xlu0 %v364, 40
      %v588 = vpop.permute.xlu0 %587
      %v590 = vadd.f32 %v586, %v588
      %592 = vrot.lane.b32.xlu0 %v562, 120
      %v593 = vpop.permute.xlu0 %592
      %595 = vrot.lane.b32.xlu0 %v590, 88
      %v596 = vpop.permute.xlu0 %595
      %v597 = vsel %vm301, %v593, 0
      %v599 = vsel %vm301, %v596, 0
      %601 = vmatprep.subr.mxu0 0.0
      %602 = vmatpush1.xpose.msra.mxu0 %v599
      %603 = vmatprep.subr.mxu0 0.0
      %604 = vmatpush1.xpose.msra.mxu0 0.0
      %605 = vmatprep.subr.mxu0 0.0
      %606 = vmatpush1.xpose.msra.mxu0 0.0
      %607 = vmatprep.subr.mxu0 0.0
      %608 = vmatpush1.xpose.msra.mxu0 0.0
      %609 = vmatprep.subr.mxu0 0.0
      %610 = vmatpush1.xpose.msra.mxu0 0.0
      %611 = vmatprep.subr.mxu0 0.0
      %612 = vmatpush1.xpose.msra.mxu0 0.0
      %613 = vmatprep.subr.mxu0 0.0
      %614 = vmatpush1.xpose.msra.mxu0 0.0
      %615 = vmatprep.subr.mxu0 0.0
      %616 = vmatpush1.xpose.msra.mxu0 0.0
      %617 = vmatprep.subr.mxu0 0.0
      %618 = vmatpush1.xpose.msra.mxu0 0.0
      %619 = vmatprep.subr.mxu0 0.0
      %620 = vmatpush1.xpose.msra.mxu0 0.0
      %621 = vmatprep.subr.mxu0 0.0
      %622 = vmatpush1.xpose.msra.mxu0 0.0
      %623 = vmatprep.subr.mxu0 0.0
      %624 = vmatpush1.xpose.msra.mxu0 0.0
      %625 = vmatprep.subr.mxu0 0.0
      %626 = vmatpush1.xpose.msra.mxu0 0.0
      %627 = vmatprep.subr.mxu0 0.0
      %628 = vmatpush1.xpose.msra.mxu0 0.0
      %629 = vmatprep.subr.mxu0 0.0
      %630 = vmatpush1.xpose.msra.mxu0 0.0
      %631 = vmatprep.subr.mxu0 0.0
      %632 = vmatpush1.xpose.msra.mxu0 0.0
      %633 = vmatprep.subr.mxu0 0.0
      %634 = vmatpush1.xpose.msra.mxu0 0.0
      %635 = vmatprep.subr.mxu0 0.0
      %636 = vmatpush1.xpose.msra.mxu0 0.0
      %637 = vmatprep.subr.mxu0 0.0
      %638 = vmatpush1.xpose.msra.mxu0 0.0
      %639 = vmatprep.subr.mxu0 0.0
      %640 = vmatpush1.xpose.msra.mxu0 0.0
      %641 = vmatprep.subr.mxu0 0.0
      %642 = vmatpush1.xpose.msra.mxu0 0.0
      %643 = vmatprep.subr.mxu0 0.0
      %644 = vmatpush1.xpose.msra.mxu0 0.0
      %645 = vmatprep.subr.mxu0 0.0
      %646 = vmatpush1.xpose.msra.mxu0 0.0
      %647 = vmatprep.subr.mxu0 0.0
      %648 = vmatpush1.xpose.msra.mxu0 0.0
      %649 = vmatprep.subr.mxu0 0.0
      %650 = vmatpush1.xpose.msra.mxu0 0.0
      %651 = vmatprep.subr.mxu0 0.0
      %652 = vmatpush1.xpose.msra.mxu0 0.0
      %653 = vmatprep.subr.mxu0 0.0
      %654 = vmatpush1.xpose.msra.mxu0 0.0
      %655 = vmatprep.subr.mxu0 0.0
      %656 = vmatpush1.xpose.msra.mxu0 0.0
      %657 = vmatprep.subr.mxu0 0.0
      %658 = vmatpush1.xpose.msra.mxu0 0.0
      %659 = vmatprep.subr.mxu0 0.0
      %660 = vmatpush1.xpose.msra.mxu0 0.0
      %661 = vmatprep.subr.mxu0 0.0
      %662 = vmatpush1.xpose.msra.mxu0 0.0
      %663 = vmatprep.subr.mxu0 0.0
      %664 = vmatpush1.xpose.msra.mxu0 0.0
      %665 = vmatprep.mubr.f32.mxu0 0.0
      %666 = vmatmul.mubr.f32.gmra.mrb[0].mxu0 %v597
      %v667 = vpop.f32.mrb[0].mxu0
      %v668 = vadd.f32 0.0, %v667
      %v669 = vpop.f32.mrb[0].mxu0
      %670 = vdwg.mxu0
      %v671 = vsel %vm301, %v668, -inf
      %672 = vmax.xlane.f32.xlu0 %v671
      %v673 = vpop.xlane.xlu0 %672
      %v674 = vsub.f32 %v668, %v673
      %v675 = vmul.f32 %v674, 1.442695
      %v676 = vpow.pop %v675
      %v677 = vsel %vm301, %v676, 0.0
      %678 = vadd.xlane.f32.xlu0 %v677
      %v679 = vpop.xlane.xlu0 %678
      %v680 = vrcp.pop %v679
      %v681 = vmul.f32 %v676, %v680
      %682 = vrot.lane.b32.xlu0 %v296, 56
      %v683 = vpop.permute.xlu0 %682
      %v686 = vsel %vm301, %v681, 0
      %688 = vmatprep.subr.mxu0 0.0
      %689 = vmatpush1.msra.mxu0 %v683
      %690 = vmatprep.subr.mxu0 0.0
      %691 = vmatpush1.msra.mxu0 0.0
      %692 = vmatprep.subr.mxu0 0.0
      %693 = vmatpush1.msra.mxu0 0.0
      %694 = vmatprep.subr.mxu0 0.0
      %695 = vmatpush1.msra.mxu0 0.0
      %696 = vmatprep.subr.mxu0 0.0
      %697 = vmatpush1.msra.mxu0 0.0
      %698 = vmatprep.subr.mxu0 0.0
      %699 = vmatpush1.msra.mxu0 0.0
      %700 = vmatprep.subr.mxu0 0.0
      %701 = vmatpush1.msra.mxu0 0.0
      %702 = vmatprep.subr.mxu0 0.0
      %703 = vmatpush1.msra.mxu0 0.0
      %704 = vmatprep.subr.mxu0 0.0
      %705 = vmatpush1.msra.mxu0 0.0
      %706 = vmatprep.subr.mxu0 0.0
      %707 = vmatpush1.msra.mxu0 0.0
      %708 = vmatprep.subr.mxu0 0.0
      %709 = vmatpush1.msra.mxu0 0.0
      %710 = vmatprep.subr.mxu0 0.0
      %711 = vmatpush1.msra.mxu0 0.0
      %712 = vmatprep.subr.mxu0 0.0
      %713 = vmatpush1.msra.mxu0 0.0
      %714 = vmatprep.subr.mxu0 0.0
      %715 = vmatpush1.msra.mxu0 0.0
      %716 = vmatprep.subr.mxu0 0.0
      %717 = vmatpush1.msra.mxu0 0.0
      %718 = vmatprep.subr.mxu0 0.0
      %719 = vmatpush1.msra.mxu0 0.0
      %720 = vmatprep.subr.mxu0 0.0
      %721 = vmatpush1.msra.mxu0 0.0
      %722 = vmatprep.subr.mxu0 0.0
      %723 = vmatpush1.msra.mxu0 0.0
      %724 = vmatprep.subr.mxu0 0.0
      %725 = vmatpush1.msra.mxu0 0.0
      %726 = vmatprep.subr.mxu0 0.0
      %727 = vmatpush1.msra.mxu0 0.0
      %728 = vmatprep.subr.mxu0 0.0
      %729 = vmatpush1.msra.mxu0 0.0
      %730 = vmatprep.subr.mxu0 0.0
      %731 = vmatpush1.msra.mxu0 0.0
      %732 = vmatprep.subr.mxu0 0.0
      %733 = vmatpush1.msra.mxu0 0.0
      %734 = vmatprep.subr.mxu0 0.0
      %735 = vmatpush1.msra.mxu0 0.0
      %736 = vmatprep.subr.mxu0 0.0
      %737 = vmatpush1.msra.mxu0 0.0
      %738 = vmatprep.subr.mxu0 0.0
      %739 = vmatpush1.msra.mxu0 0.0
      %740 = vmatprep.subr.mxu0 0.0
      %741 = vmatpush1.msra.mxu0 0.0
      %742 = vmatprep.subr.mxu0 0.0
      %743 = vmatpush1.msra.mxu0 0.0
      %744 = vmatprep.subr.mxu0 0.0
      %745 = vmatpush1.msra.mxu0 0.0
      %746 = vmatprep.subr.mxu0 0.0
      %747 = vmatpush1.msra.mxu0 0.0
      %748 = vmatprep.subr.mxu0 0.0
      %749 = vmatpush1.msra.mxu0 0.0
      %750 = vmatprep.subr.mxu0 0.0
      %751 = vmatpush1.msra.mxu0 0.0
      %752 = vmatprep.mubr.f32.mxu0 0.0
      %753 = vmatmul.mubr.f32.gmra.mrb[0].mxu0 %v686
      %v754 = vpop.f32.mrb[0].mxu0
      %v755 = vadd.f32 0.0, %v754
      %v756 = vpop.f32.mrb[0].mxu0
      %757 = vdwg.mxu0
      %758 = vrot.lane.b32.xlu0 %v295, 112
      %v759 = vpop.permute.xlu0 %758
      %v761 = vsel %vm301, %v759, 0.0
      %762 = vadd.xlane.f32.xlu0 %v761
      %v763 = vpop.xlane.xlu0 %762
      %v764 = vmul.f32 %v763, %v305
      %v765 = vsub.f32 %v295, %v764
      %v766 = vmul.f32 %v765, %v765
      %768 = vrot.lane.b32.xlu0 %v766, 112
      %v769 = vpop.permute.xlu0 %768
      %v771 = vsel %vm301, %v769, 0.0
      %772 = vadd.xlane.f32.xlu0 %v771
      %v773 = vpop.xlane.xlu0 %772
      %v774 = vmul.f32 %v773, %v305
      %v775 = vadd.f32 %v774, 1e-05
      %v776 = vrsqrt.pop %v775
      %v777 = vmul.f32 %v765, %v776
      %778 = vrot.lane.b32.xlu0 %v320, 16
      %v779 = vpop.permute.xlu0 %778
      %v781 = vmul.f32 %v777, %v779
      %782 = vrot.lane.b32.xlu0 %v327, 16
      %v783 = vpop.permute.xlu0 %782
      %v785 = vadd.f32 %v781, %v783
      %786 = vrot.lane.b32.xlu0 %v296, 80
      %v787 = vpop.permute.xlu0 %786
      %v789 = vsel %vm301, %v787, 0.0
      %790 = vadd.xlane.f32.xlu0 %v789
      %v791 = vpop.xlane.xlu0 %790
      %v792 = vmul.f32 %v791, %v305
      %v793 = vsub.f32 %v296, %v792
      %v794 = vmul.f32 %v793, %v793
      %796 = vrot.lane.b32.xlu0 %v794, 80
      %v797 = vpop.permute.xlu0 %796
      %v799 = vsel %vm301, %v797, 0.0
      %800 = vadd.xlane.f32.xlu0 %v799
      %v801 = vpop.xlane.xlu0 %800
      %v802 = vmul.f32 %v801, %v305
      %v803 = vadd.f32 %v802, 1e-05
      %v804 = vrsqrt.pop %v803
      %v805 = vmul.f32 %v793, %v804
      %806 = vrot.lane.b32.xlu0 %v355, 48
      %v807 = vpop.permute.xlu0 %806
      %v809 = vmul.f32 %v805, %v807
      %810 = vrot.lane.b32.xlu0 %v364, 48
      %v811 = vpop.permute.xlu0 %810
      %v813 = vadd.f32 %v809, %v811
      %815 = vrot.lane.b32.xlu0 %v785, 112
      %v816 = vpop.permute.xlu0 %815
      %818 = vrot.lane.b32.xlu0 %v813, 80
      %v819 = vpop.permute.xlu0 %818
      %v820 = vsel %vm301, %v816, 0
      %v822 = vsel %vm301, %v819, 0
      %824 = vmatprep.subr.mxu0 0.0
      %825 = vmatpush1.xpose.msra.mxu0 %v822
      %826 = vmatprep.subr.mxu0 0.0
      %827 = vmatpush1.xpose.msra.mxu0 0.0
      %828 = vmatprep.subr.mxu0 0.0
      %829 = vmatpush1.xpose.msra.mxu0 0.0
      %830 = vmatprep.subr.mxu0 0.0
      %831 = vmatpush1.xpose.msra.mxu0 0.0
      %832 = vmatprep.subr.mxu0 0.0
      %833 = vmatpush1.xpose.msra.mxu0 0.0
      %834 = vmatprep.subr.mxu0 0.0
      %835 = vmatpush1.xpose.msra.mxu0 0.0
      %836 = vmatprep.subr.mxu0 0.0
      %837 = vmatpush1.xpose.msra.mxu0 0.0
      %838 = vmatprep.subr.mxu0 0.0
      %839 = vmatpush1.xpose.msra.mxu0 0.0
      %840 = vmatprep.subr.mxu0 0.0
      %841 = vmatpush1.xpose.msra.mxu0 0.0
      %842 = vmatprep.subr.mxu0 0.0
      %843 = vmatpush1.xpose.msra.mxu0 0.0
      %844 = vmatprep.subr.mxu0 0.0
      %845 = vmatpush1.xpose.msra.mxu0 0.0
      %846 = vmatprep.subr.mxu0 0.0
      %847 = vmatpush1.xpose.msra.mxu0 0.0
      %848 = vmatprep.subr.mxu0 0.0
      %849 = vmatpush1.xpose.msra.mxu0 0.0
      %850 = vmatprep.subr.mxu0 0.0
      %851 = vmatpush1.xpose.msra.mxu0 0.0
      %852 = vmatprep.subr.mxu0 0.0
      %853 = vmatpush1.xpose.msra.mxu0 0.0
      %854 = vmatprep.subr.mxu0 0.0
      %855 = vmatpush1.xpose.msra.mxu0 0.0
      %856 = vmatprep.subr.mxu0 0.0
      %857 = vmatpush1.xpose.msra.mxu0 0.0
      %858 = vmatprep.subr.mxu0 0.0
      %859 = vmatpush1.xpose.msra.mxu0 0.0
      %860 = vmatprep.subr.mxu0 0.0
      %861 = vmatpush1.xpose.msra.mxu0 0.0
      %862 = vmatprep.subr.mxu0 0.0
      %863 = vmatpush1.xpose.msra.mxu0 0.0
      %864 = vmatprep.subr.mxu0 0.0
      %865 = vmatpush1.xpose.msra.mxu0 0.0
      %866 = vmatprep.subr.mxu0 0.0
      %867 = vmatpush1.xpose.msra.mxu0 0.0
      %868 = vmatprep.subr.mxu0 0.0
      %869 = vmatpush1.xpose.msra.mxu0 0.0
      %870 = vmatprep.subr.mxu0 0.0
      %871 = vmatpush1.xpose.msra.mxu0 0.0
      %872 = vmatprep.subr.mxu0 0.0
      %873 = vmatpush1.xpose.msra.mxu0 0.0
      %874 = vmatprep.subr.mxu0 0.0
      %875 = vmatpush1.xpose.msra.mxu0 0.0
      %876 = vmatprep.subr.mxu0 0.0
      %877 = vmatpush1.xpose.msra.mxu0 0.0
      %878 = vmatprep.subr.mxu0 0.0
      %879 = vmatpush1.xpose.msra.mxu0 0.0
      %880 = vmatprep.subr.mxu0 0.0
      %881 = vmatpush1.xpose.msra.mxu0 0.0
      %882 = vmatprep.subr.mxu0 0.0
      %883 = vmatpush1.xpose.msra.mxu0 0.0
      %884 = vmatprep.subr.mxu0 0.0
      %885 = vmatpush1.xpose.msra.mxu0 0.0
      %886 = vmatprep.subr.mxu0 0.0
      %887 = vmatpush1.xpose.msra.mxu0 0.0
      %888 = vmatprep.mubr.f32.mxu0 0.0
      %889 = vmatmul.mubr.f32.gmra.mrb[0].mxu0 %v820
      %v890 = vpop.f32.mrb[0].mxu0
      %v891 = vadd.f32 0.0, %v890
      %v892 = vpop.f32.mrb[0].mxu0
      %893 = vdwg.mxu0
      %v894 = vsel %vm301, %v891, -inf
      %895 = vmax.xlane.f32.xlu0 %v894
      %v896 = vpop.xlane.xlu0 %895
      %v897 = vsub.f32 %v891, %v896
      %v898 = vmul.f32 %v897, 1.442695
      %v899 = vpow.pop %v898
      %v900 = vsel %vm301, %v899, 0.0
      %901 = vadd.xlane.f32.xlu0 %v900
      %v902 = vpop.xlane.xlu0 %901
      %v903 = vrcp.pop %v902
      %v904 = vmul.f32 %v899, %v903
      %905 = vrot.lane.b32.xlu0 %v296, 48
      %v906 = vpop.permute.xlu0 %905
      %v909 = vsel %vm301, %v904, 0
      %911 = vmatprep.subr.mxu0 0.0
      %912 = vmatpush1.msra.mxu0 %v906
      %913 = vmatprep.subr.mxu0 0.0
      %914 = vmatpush1.msra.mxu0 0.0
      %915 = vmatprep.subr.mxu0 0.0
      %916 = vmatpush1.msra.mxu0 0.0
      %917 = vmatprep.subr.mxu0 0.0
      %918 = vmatpush1.msra.mxu0 0.0
      %919 = vmatprep.subr.mxu0 0.0
      %920 = vmatpush1.msra.mxu0 0.0
      %921 = vmatprep.subr.mxu0 0.0
      %922 = vmatpush1.msra.mxu0 0.0
      %923 = vmatprep.subr.mxu0 0.0
      %924 = vmatpush1.msra.mxu0 0.0
      %925 = vmatprep.subr.mxu0 0.0
      %926 = vmatpush1.msra.mxu0 0.0
      %927 = vmatprep.subr.mxu0 0.0
      %928 = vmatpush1.msra.mxu0 0.0
      %929 = vmatprep.subr.mxu0 0.0
      %930 = vmatpush1.msra.mxu0 0.0
      %931 = vmatprep.subr.mxu0 0.0
      %932 = vmatpush1.msra.mxu0 0.0
      %933 = vmatprep.subr.mxu0 0.0
      %934 = vmatpush1.msra.mxu0 0.0
      %935 = vmatprep.subr.mxu0 0.0
      %936 = vmatpush1.msra.mxu0 0.0
      %937 = vmatprep.subr.mxu0 0.0
      %938 = vmatpush1.msra.mxu0 0.0
      %939 = vmatprep.subr.mxu0 0.0
      %940 = vmatpush1.msra.mxu0 0.0
      %941 = vmatprep.subr.mxu0 0.0
      %942 = vmatpush1.msra.mxu0 0.0
      %943 = vmatprep.subr.mxu0 0.0
      %944 = vmatpush1.msra.mxu0 0.0
      %945 = vmatprep.subr.mxu0 0.0
      %946 = vmatpush1.msra.mxu0 0.0
      %947 = vmatprep.subr.mxu0 0.0
      %948 = vmatpush1.msra.mxu0 0.0
      %949 = vmatprep.subr.mxu0 0.0
      %950 = vmatpush1.msra.mxu0 0.0
      %951 = vmatprep.subr.mxu0 0.0
      %952 = vmatpush1.msra.mxu0 0.0
      %953 = vmatprep.subr.mxu0 0.0
      %954 = vmatpush1.msra.mxu0 0.0
      %955 = vmatprep.subr.mxu0 0.0
      %956 = vmatpush1.msra.mxu0 0.0
      %957 = vmatprep.subr.mxu0 0.0
      %958 = vmatpush1.msra.mxu0 0.0
      %959 = vmatprep.subr.mxu0 0.0
      %960 = vmatpush1.msra.mxu0 0.0
      %961 = vmatprep.subr.mxu0 0.0
      %962 = vmatpush1.msra.mxu0 0.0
      %963 = vmatprep.subr.mxu0 0.0
      %964 = vmatpush1.msra.mxu0 0.0
      %965 = vmatprep.subr.mxu0 0.0
      %966 = vmatpush1.msra.mxu0 0.0
      %967 = vmatprep.subr.mxu0 0.0
      %968 = vmatpush1.msra.mxu0 0.0
      %969 = vmatprep.subr.mxu0 0.0
      %970 = vmatpush1.msra.mxu0 0.0
      %971 = vmatprep.subr.mxu0 0.0
      %972 = vmatpush1.msra.mxu0 0.0
      %973 = vmatprep.subr.mxu0 0.0
      %974 = vmatpush1.msra.mxu0 0.0
      %975 = vmatprep.mubr.f32.mxu0 0.0
      %976 = vmatmul.mubr.f32.gmra.mrb[0].mxu0 %v909
      %v977 = vpop.f32.mrb[0].mxu0
      %v978 = vadd.f32 0.0, %v977
      %v979 = vpop.f32.mrb[0].mxu0
      %980 = vdwg.mxu0
      %981 = vrot.lane.b32.xlu0 %v295, 104
      %v982 = vpop.permute.xlu0 %981
      %v984 = vsel %vm301, %v982, 0.0
      %985 = vadd.xlane.f32.xlu0 %v984
      %v986 = vpop.xlane.xlu0 %985
      %v987 = vmul.f32 %v986, %v305
      %v988 = vsub.f32 %v295, %v987
      %v989 = vmul.f32 %v988, %v988
      %991 = vrot.lane.b32.xlu0 %v989, 104
      %v992 = vpop.permute.xlu0 %991
      %v994 = vsel %vm301, %v992, 0.0
      %995 = vadd.xlane.f32.xlu0 %v994
      %v996 = vpop.xlane.xlu0 %995
      %v997 = vmul.f32 %v996, %v305
      %v998 = vadd.f32 %v997, 1e-05
      %v999 = vrsqrt.pop %v998
      %v1000 = vmul.f32 %v988, %v999
      %1001 = vrot.lane.b32.xlu0 %v320, 24
      %v1002 = vpop.permute.xlu0 %1001
      %v1004 = vmul.f32 %v1000, %v1002
      %1005 = vrot.lane.b32.xlu0 %v327, 24
      %v1006 = vpop.permute.xlu0 %1005
      %v1008 = vadd.f32 %v1004, %v1006
      %1009 = vrot.lane.b32.xlu0 %v296, 72
      %v1010 = vpop.permute.xlu0 %1009
      %v1012 = vsel %vm301, %v1010, 0.0
      %1013 = vadd.xlane.f32.xlu0 %v1012
      %v1014 = vpop.xlane.xlu0 %1013
      %v1015 = vmul.f32 %v1014, %v305
      %v1016 = vsub.f32 %v296, %v1015
      %v1017 = vmul.f32 %v1016, %v1016
      %1019 = vrot.lane.b32.xlu0 %v1017, 72
      %v1020 = vpop.permute.xlu0 %1019
      %v1022 = vsel %vm301, %v1020, 0.0
      %1023 = vadd.xlane.f32.xlu0 %v1022
      %v1024 = vpop.xlane.xlu0 %1023
      %v1025 = vmul.f32 %v1024, %v305
      %v1026 = vadd.f32 %v1025, 1e-05
      %v1027 = vrsqrt.pop %v1026
      %v1028 = vmul.f32 %v1016, %v1027
      %1029 = vrot.lane.b32.xlu0 %v355, 56
      %v1030 = vpop.permute.xlu0 %1029
      %v1032 = vmul.f32 %v1028, %v1030
      %1033 = vrot.lane.b32.xlu0 %v364, 56
      %v1034 = vpop.permute.xlu0 %1033
      %v1036 = vadd.f32 %v1032, %v1034
      %1038 = vrot.lane.b32.xlu0 %v1008, 104
      %v1039 = vpop.permute.xlu0 %1038
      %1041 = vrot.lane.b32.xlu0 %v1036, 72
      %v1042 = vpop.permute.xlu0 %1041
      %v1043 = vsel %vm301, %v1039, 0
      %v1045 = vsel %vm301, %v1042, 0
      %1047 = vmatprep.subr.mxu0 0.0
      %1048 = vmatpush1.xpose.msra.mxu0 %v1045
      %1049 = vmatprep.subr.mxu0 0.0
      %1050 = vmatpush1.xpose.msra.mxu0 0.0
      %1051 = vmatprep.subr.mxu0 0.0
      %1052 = vmatpush1.xpose.msra.mxu0 0.0
      %1053 = vmatprep.subr.mxu0 0.0
      %1054 = vmatpush1.xpose.msra.mxu0 0.0
      %1055 = vmatprep.subr.mxu0 0.0
      %1056 = vmatpush1.xpose.msra.mxu0 0.0
      %1057 = vmatprep.subr.mxu0 0.0
      %1058 = vmatpush1.xpose.msra.mxu0 0.0
      %1059 = vmatprep.subr.mxu0 0.0
      %1060 = vmatpush1.xpose.msra.mxu0 0.0
      %1061 = vmatprep.subr.mxu0 0.0
      %1062 = vmatpush1.xpose.msra.mxu0 0.0
      %1063 = vmatprep.subr.mxu0 0.0
      %1064 = vmatpush1.xpose.msra.mxu0 0.0
      %1065 = vmatprep.subr.mxu0 0.0
      %1066 = vmatpush1.xpose.msra.mxu0 0.0
      %1067 = vmatprep.subr.mxu0 0.0
      %1068 = vmatpush1.xpose.msra.mxu0 0.0
      %1069 = vmatprep.subr.mxu0 0.0
      %1070 = vmatpush1.xpose.msra.mxu0 0.0
      %1071 = vmatprep.subr.mxu0 0.0
      %1072 = vmatpush1.xpose.msra.mxu0 0.0
      %1073 = vmatprep.subr.mxu0 0.0
      %1074 = vmatpush1.xpose.msra.mxu0 0.0
      %1075 = vmatprep.subr.mxu0 0.0
      %1076 = vmatpush1.xpose.msra.mxu0 0.0
      %1077 = vmatprep.subr.mxu0 0.0
      %1078 = vmatpush1.xpose.msra.mxu0 0.0
      %1079 = vmatprep.subr.mxu0 0.0
      %1080 = vmatpush1.xpose.msra.mxu0 0.0
      %1081 = vmatprep.subr.mxu0 0.0
      %1082 = vmatpush1.xpose.msra.mxu0 0.0
      %1083 = vmatprep.subr.mxu0 0.0
      %1084 = vmatpush1.xpose.msra.mxu0 0.0
      %1085 = vmatprep.subr.mxu0 0.0
      %1086 = vmatpush1.xpose.msra.mxu0 0.0
      %1087 = vmatprep.subr.mxu0 0.0
      %1088 = vmatpush1.xpose.msra.mxu0 0.0
      %1089 = vmatprep.subr.mxu0 0.0
      %1090 = vmatpush1.xpose.msra.mxu0 0.0
      %1091 = vmatprep.subr.mxu0 0.0
      %1092 = vmatpush1.xpose.msra.mxu0 0.0
      %1093 = vmatprep.subr.mxu0 0.0
      %1094 = vmatpush1.xpose.msra.mxu0 0.0
      %1095 = vmatprep.subr.mxu0 0.0
      %1096 = vmatpush1.xpose.msra.mxu0 0.0
      %1097 = vmatprep.subr.mxu0 0.0
      %1098 = vmatpush1.xpose.msra.mxu0 0.0
      %1099 = vmatprep.subr.mxu0 0.0
      %1100 = vmatpush1.xpose.msra.mxu0 0.0
      %1101 = vmatprep.subr.mxu0 0.0
      %1102 = vmatpush1.xpose.msra.mxu0 0.0
      %1103 = vmatprep.subr.mxu0 0.0
      %1104 = vmatpush1.xpose.msra.mxu0 0.0
      %1105 = vmatprep.subr.mxu0 0.0
      %1106 = vmatpush1.xpose.msra.mxu0 0.0
      %1107 = vmatprep.subr.mxu0 0.0
      %1108 = vmatpush1.xpose.msra.mxu0 0.0
      %1109 = vmatprep.subr.mxu0 0.0
      %1110 = vmatpush1.xpose.msra.mxu0 0.0
      %1111 = vmatprep.mubr.f32.mxu0 0.0
      %1112 = vmatmul.mubr.f32.gmra.mrb[0].mxu0 %v1043
      %v1113 = vpop.f32.mrb[0].mxu0
      %v1114 = vadd.f32 0.0, %v1113
      %v1115 = vpop.f32.mrb[0].mxu0
      %1116 = vdwg.mxu0
      %v1117 = vsel %vm301, %v1114, -inf
      %1118 = vmax.xlane.f32.xlu0 %v1117
      %v1119 = vpop.xlane.xlu0 %1118
      %v1120 = vsub.f32 %v1114, %v1119
      %v1121 = vmul.f32 %v1120, 1.442695
      %v1122 = vpow.pop %v1121
      %v1123 = vsel %vm301, %v1122, 0.0
      %1124 = vadd.xlane.f32.xlu0 %v1123
      %v1125 = vpop.xlane.xlu0 %1124
      %v1126 = vrcp.pop %v1125
      %v1127 = vmul.f32 %v1122, %v1126
      %1128 = vrot.lane.b32.xlu0 %v296, 40
      %v1129 = vpop.permute.xlu0 %1128
      %v1132 = vsel %vm301, %v1127, 0
      %1134 = vmatprep.subr.mxu0 0.0
      %1135 = vmatpush1.msra.mxu0 %v1129
      %1136 = vmatprep.subr.mxu0 0.0
      %1137 = vmatpush1.msra.mxu0 0.0
      %1138 = vmatprep.subr.mxu0 0.0
      %1139 = vmatpush1.msra.mxu0 0.0
      %1140 = vmatprep.subr.mxu0 0.0
      %1141 = vmatpush1.msra.mxu0 0.0
      %1142 = vmatprep.subr.mxu0 0.0
      %1143 = vmatpush1.msra.mxu0 0.0
      %1144 = vmatprep.subr.mxu0 0.0
      %1145 = vmatpush1.msra.mxu0 0.0
      %1146 = vmatprep.subr.mxu0 0.0
      %1147 = vmatpush1.msra.mxu0 0.0
      %1148 = vmatprep.subr.mxu0 0.0
      %1149 = vmatpush1.msra.mxu0 0.0
      %1150 = vmatprep.subr.mxu0 0.0
      %1151 = vmatpush1.msra.mxu0 0.0
      %1152 = vmatprep.subr.mxu0 0.0
      %1153 = vmatpush1.msra.mxu0 0.0
      %1154 = vmatprep.subr.mxu0 0.0
      %1155 = vmatpush1.msra.mxu0 0.0
      %1156 = vmatprep.subr.mxu0 0.0
      %1157 = vmatpush1.msra.mxu0 0.0
      %1158 = vmatprep.subr.mxu0 0.0
      %1159 = vmatpush1.msra.mxu0 0.0
      %1160 = vmatprep.subr.mxu0 0.0
      %1161 = vmatpush1.msra.mxu0 0.0
      %1162 = vmatprep.subr.mxu0 0.0
      %1163 = vmatpush1.msra.mxu0 0.0
      %1164 = vmatprep.subr.mxu0 0.0
      %1165 = vmatpush1.msra.mxu0 0.0
      %1166 = vmatprep.subr.mxu0 0.0
      %1167 = vmatpush1.msra.mxu0 0.0
      %1168 = vmatprep.subr.mxu0 0.0
      %1169 = vmatpush1.msra.mxu0 0.0
      %1170 = vmatprep.subr.mxu0 0.0
      %1171 = vmatpush1.msra.mxu0 0.0
      %1172 = vmatprep.subr.mxu0 0.0
      %1173 = vmatpush1.msra.mxu0 0.0
      %1174 = vmatprep.subr.mxu0 0.0
      %1175 = vmatpush1.msra.mxu0 0.0
      %1176 = vmatprep.subr.mxu0 0.0
      %1177 = vmatpush1.msra.mxu0 0.0
      %1178 = vmatprep.subr.mxu0 0.0
      %1179 = vmatpush1.msra.mxu0 0.0
      %1180 = vmatprep.subr.mxu0 0.0
      %1181 = vmatpush1.msra.mxu0 0.0
      %1182 = vmatprep.subr.mxu0 0.0
      %1183 = vmatpush1.msra.mxu0 0.0
      %1184 = vmatprep.subr.mxu0 0.0
      %1185 = vmatpush1.msra.mxu0 0.0
      %1186 = vmatprep.subr.mxu0 0.0
      %1187 = vmatpush1.msra.mxu0 0.0
      %1188 = vmatprep.subr.mxu0 0.0
      %1189 = vmatpush1.msra.mxu0 0.0
      %1190 = vmatprep.subr.mxu0 0.0
      %1191 = vmatpush1.msra.mxu0 0.0
      %1192 = vmatprep.subr.mxu0 0.0
      %1193 = vmatpush1.msra.mxu0 0.0
      %1194 = vmatprep.subr.mxu0 0.0
      %1195 = vmatpush1.msra.mxu0 0.0
      %1196 = vmatprep.subr.mxu0 0.0
      %1197 = vmatpush1.msra.mxu0 0.0
      %1198 = vmatprep.mubr.f32.mxu0 0.0
      %1199 = vmatmul.mubr.f32.gmra.mrb[0].mxu0 %v1132
      %v1200 = vpop.f32.mrb[0].mxu0
      %v1201 = vadd.f32 0.0, %v1200
      %v1202 = vpop.f32.mrb[0].mxu0
      %1203 = vdwg.mxu0
      %1205 = vrot.lane.b32.xlu0 %v755, 8
      %v1206 = vpop.permute.xlu0 %1205
      %1209 = vrot.lane.b32.xlu0 %v978, 16
      %v1210 = vpop.permute.xlu0 %1209
      %1213 = vrot.lane.b32.xlu0 %v1201, 24
      %v1214 = vpop.permute.xlu0 %1213
      %v1216 = vsel %vm301, %v531, %v1206
      %vm1217 = vcmask 130048
      %v1218 = vsel %vm1217, %v1216, %v1210
      %vm1219 = vcmask 195584
      %v1220 = vsel %vm1219, %v1218, %v1214
      %vm1221 = vcmask 261120
      %1222 = vst.msk [vmem:[%s294] sm:$0xff] %vm1221, %v1220
      %p1223 = scmp.lt.s32.totalorder %s21, 1
      %s1224 = scalar_select %p1223, %s21, 1
      %p1225 = scmp.lt.s32.totalorder %s22, 0
      %s1226 = scalar_select %p1225, %s22, 0
      %s1227 = sadd.s32 %s1226, %s1224
      %s1228 = smul.addr %s1227, 8
      %s1229 = scalar_lea.vmem %s6, %s1228
      // Predicated region
      $region45: #{_lambda_.4} parent=43 // pred_check
        %p1230 = pneg %p187
      $region46: #{_lambda_.4} parent=43 // pred_check_branch
        %1232 = sbr.rel (%p1230) target = $region48
      $region47: #{_lambda_.4} parent=43 // pred_region
        _
      $region48: #{_lambda_.4} parent=43 // pred_fallthru
        _
    $region44: #{_lambda_.4} parent=5 // pred_fallthru
      _
    %p1233 = scmp.le.s32.totalorder 2, %s12
    // Predicated region
    $region49: #{_lambda_.4} parent=5 // pred_check
      %p1234 = pneg %p1233
    $region50: #{_lambda_.4} parent=5 // pred_check_branch
      %1236 = sbr.rel (%p1234) target = $region52
    $region51: #{_lambda_.4} parent=5 // pred_region
      %s1237 = ssub.s32 %s12, 2
      // Predicated region
      $region53: #{_lambda_.4} parent=51 // pred_check
        %p1238 = pneg %p193
      $region54: #{_lambda_.4} parent=51 // pred_check_branch
        %1240 = sbr.rel (%p1238) target = $region56
      $region55: #{_lambda_.4} parent=51 // pred_region
        %p1241 = scmp.lt.s32.totalorder %s23, 1
        %s1242 = scalar_select %p1241, %s23, 1
        %p1243 = scmp.lt.s32.totalorder %s24, 0
        %s1244 = scalar_select %p1243, %s24, 0
        %s1245 = sadd.s32 %s1244, %s1242
        %s1246 = smul.addr %s1245, 8
        %s1247 = scalar_lea.vmem %s6, %s1246
      $region56: #{_lambda_.4} parent=51 // pred_fallthru
        _
    $region52: #{_lambda_.4} parent=5 // pred_fallthru
      _
  $region6: #{_lambda_.4} parent=0 // loop_footer
    %s16 = sadd.s32 1, %s12
  $region7: #{_lambda_.4} parent=0 // loop_footer_branch
    %11 = sbr.rel target = $region3
  $region8: #{_lambda_.4} parent=0 // loop_exit
    _

</llo_original>
